<compile_context>
chip_gen: v7x
topology: tpu7x:2x2x1
jax: 0.10.0
libtpu: 0.0.40
codegen_flags: <defaults>
</compile_context>

<pallas_src>
import jax
import jax.numpy as jnp
from jax.experimental import pallas as pl
from jax.experimental.pallas import tpu as pltpu

MASK_PENALTY = 1.0e10


def _bahdanau_kernel(enc_ref, dec_ref, addg_ref, addp_ref,
                     w1cat_ref, w2g_ref, w2_ref, vg_ref, v_ref,
                     aw_ref, awln_ref):
    """One (TB, S) batch tile per grid step.  Scores are lane-dense rows.

    enc_ref   : (TB, S, H)  encoder hidden states
    dec_ref   : (TB, 1, H)  decoder last hidden state
    addg_ref  : (TB, 1, S)  V_g bias - 1e10*(1-mask)   (pre-folded in wrapper)
    addp_ref  : (TB, 1, S)  V   bias - 1e10*(1-mask)   (pre-folded in wrapper)
    w1cat_ref : (H, 2H)     [W1_g^T | W1^T] fused encoder-side weights
    w2g_ref   : (H, H)      W2_g^T
    w2_ref    : (H, H)      W2^T
    vg_ref    : (1, H)      V_g weight row
    v_ref     : (1, H)      V   weight row
    aw_ref    : (TB, 1, S)  softmax attention weights      (output)
    awln_ref  : (TB, 1, S)  log-softmax attention weights  (output)
    """
    tb, s_len, h = enc_ref.shape

    enc = enc_ref[...]                            # (TB, S, H)
    dec = dec_ref[...][:, 0, :]                   # (TB, H)
    add_g = addg_ref[...][:, 0, :]                # (TB, S)
    add_p = addp_ref[...][:, 0, :]                # (TB, S)

    # ---- fused encoder-side matmul: one MXU pass over enc for both stages ----
    enc2d = enc.reshape(tb * s_len, h)            # (TB*S, H): M = TB*S
    w1_both = jnp.dot(enc2d, w1cat_ref[...],
                      preferred_element_type=jnp.float32)      # (TB*S, 2H)
    w1_both = w1_both.reshape(tb, s_len, 2 * h)
    w1_e_g = w1_both[:, :, :h]                    # (TB, S, H)
    w1_e = w1_both[:, :, h:]                      # (TB, S, H)

    # ---------------- stage 1: glimpse attention ----------------
    w2_d_g = jnp.dot(dec, w2g_ref[...],
                     preferred_element_type=jnp.float32)       # (TB, H)
    t_g = jnp.tanh(w1_e_g + w2_d_g[:, None, :])                # (TB, S, H)
    s_g = jnp.sum(t_g * vg_ref[...], axis=-1) + add_g          # (TB, S) lane rows

    m_g = jnp.max(s_g, axis=-1, keepdims=True)
    e_g = jnp.exp(s_g - m_g)
    aw_g = e_g * pl.reciprocal(jnp.sum(e_g, axis=-1, keepdims=True))  # (TB, S)

    # glimpse on the MXU: (TB,1,S) @ (TB,S,H) -> (TB,1,H)
    glimpse = jnp.einsum('bqs,bsh->bqh', aw_g[:, None, :], enc,
                         preferred_element_type=jnp.float32)[:, 0, :] + dec

    # ---------------- stage 2: pointer attention ----------------
    w2_d = jnp.dot(glimpse, w2_ref[...],
                   preferred_element_type=jnp.float32)         # (TB, H)
    t = jnp.tanh(w1_e + w2_d[:, None, :])                      # (TB, S, H)
    s = jnp.sum(t * v_ref[...], axis=-1) + add_p               # (TB, S)

    m = jnp.max(s, axis=-1, keepdims=True)
    z = s - m
    e = jnp.exp(z)
    denom = jnp.sum(e, axis=-1, keepdims=True)
    inv = pl.reciprocal(denom)
    aw_ref[...] = (e * inv)[:, None, :]                        # lane-dense store
    awln_ref[...] = (z - jnp.log(denom))[:, None, :]


def _pick_block_b(B, S, H):
    """Pick the batch tile TB: keep the double-buffered enc block well inside
    VMEM, prefer TB*S large enough to fill the MXU M dimension, and keep a
    >=2-step grid when possible (so v7x's 2 TensorCores both get work)."""
    budget = 8 * 1024 * 1024                 # bytes for one double-buffered enc block
    divisors = [d for d in range(1, B + 1) if B % d == 0]
    cands = [d for d in divisors if 2 * d * S * H * 4 <= budget] or [1]
    for d in cands:                          # smallest tile already at MXU-filling M
        if d * S >= 256 and (B // d >= 2 or d == B):
            return d
    multi = [d for d in cands if B // d >= 2]
    return multi[-1] if multi else cands[-1]


def bahdanau_attention(enc_hid_states, dec_last_hid_state, pointer_mask, params,
                       block_b=None):
    """Pallas wrapper.

    enc_hid_states     : (B, S, H) float32
    dec_last_hid_state : (1, B, H) float32   (PyTorch RNN last-state layout)
    pointer_mask       : (B, S)    float32   (1 = valid position)
    returns (attention_weights, attention_weights_ln), each (B, S)
    """
    B, S, H = enc_hid_states.shape
    tb = block_b if block_b is not None else _pick_block_b(B, S, H)
    assert B % tb == 0, "batch tile must divide the batch"

    # glue (plain JAX): layout plumbing, weight fusion, bias/mask folding
    dec3 = dec_last_hid_state[0][:, None, :]                        # (B, 1, H)
    neg = MASK_PENALTY * (1.0 - pointer_mask)                       # (B, S)
    add_g = (params["V_g_b"][0] - neg)[:, None, :]                  # (B, 1, S)
    add_p = (params["V_b"][0] - neg)[:, None, :]                    # (B, 1, S)
    w1cat = jnp.concatenate([params["W1_g"].T, params["W1"].T], axis=1)  # (H, 2H)
    w2g_t = params["W2_g"].T                                        # (H, H)
    w2_t = params["W2"].T                                           # (H, H)
    vg_row = params["V_g_w"]                                        # (1, H)
    v_row = params["V_w"]                                           # (1, H)

    enc_spec = pl.BlockSpec((tb, S, H), lambda b: (b, 0, 0))
    dec_spec = pl.BlockSpec((tb, 1, H), lambda b: (b, 0, 0))
    row_spec = pl.BlockSpec((tb, 1, S), lambda b: (b, 0, 0))
    w1cat_spec = pl.BlockSpec((H, 2 * H), lambda b: (0, 0))
    w_spec = pl.BlockSpec((H, H), lambda b: (0, 0))
    vrow_spec = pl.BlockSpec((1, H), lambda b: (0, 0))

    aw3, awln3 = pl.pallas_call(
        _bahdanau_kernel,
        out_shape=(jax.ShapeDtypeStruct((B, 1, S), jnp.float32),
                   jax.ShapeDtypeStruct((B, 1, S), jnp.float32)),
        grid=(B // tb,),
        in_specs=[enc_spec, dec_spec, row_spec, row_spec,
                  w1cat_spec, w_spec, w_spec, vrow_spec, vrow_spec],
        out_specs=(row_spec, row_spec),
        compiler_params=pltpu.CompilerParams(
            dimension_semantics=("parallel",),
            vmem_limit_bytes=32 * 1024 * 1024),
    )(enc_hid_states, dec3, add_g, add_p,
      w1cat, w2g_t, w2_t, vg_row, v_row)

    return aw3[:, 0, :], awln3[:, 0, :]


def reference_forward(enc, dec_last, mask, p):
    """Pure-JAX mirror of the PyTorch forward (softmax=True)."""
    w1_e_g = enc @ p["W1_g"].T                               # (B, S, H)
    w2_d_g = jnp.swapaxes(dec_last @ p["W2_g"].T, 0, 1)      # (B, 1, H)
    t_g = jnp.tanh(w1_e_g + w2_d_g)
    s_g = (t_g @ p["V_g_w"].T + p["V_g_b"])[..., 0]          # (B, S)
    s_g = s_g - MASK_PENALTY * (1.0 - mask)
    aw_g = jax.nn.softmax(s_g, axis=1)
    glimpse = jnp.einsum("bs,bsh->bh", aw_g, enc) + dec_last[0]
    w1_e = enc @ p["W1"].T
    w2_d = (glimpse @ p["W2"].T)[:, None, :]
    t = jnp.tanh(w1_e + w2_d)
    s = (t @ p["V_w"].T + p["V_b"])[..., 0]
    s = s - MASK_PENALTY * (1.0 - mask)
    return jax.nn.softmax(s, axis=1), jax.nn.log_softmax(s, axis=1)


def init_params(key, hidden_size):
    """Deterministic nn.Linear-style init (uniform ±1/sqrt(fan_in))."""
    bound = 1.0 / float(hidden_size) ** 0.5
    ks = jax.random.split(key, 8)
    u = lambda k, shape: jax.random.uniform(k, shape, jnp.float32, -bound, bound)
    return {
        "W1_g": u(ks[0], (hidden_size, hidden_size)),
        "W2_g": u(ks[1], (hidden_size, hidden_size)),
        "V_g_w": u(ks[2], (1, hidden_size)),
        "V_g_b": u(ks[3], (1,)),
        "W1": u(ks[4], (hidden_size, hidden_size)),
        "W2": u(ks[5], (hidden_size, hidden_size)),
        "V_w": u(ks[6], (1, hidden_size)),
        "V_b": u(ks[7], (1,)),
    }


if __name__ == "__main__":
    B, S, H = 4, 8, 32   # small test shapes; B=4 gives a 2-step grid with TB=2

    key = jax.random.PRNGKey(0)
    k_param, k_enc, k_dec = jax.random.split(key, 3)

    params = init_params(k_param, H)
    enc = jax.random.normal(k_enc, (B, S, H), jnp.float32)
    dec_last = jax.random.normal(k_dec, (1, B, H), jnp.float32)
    # deterministic ragged mask: valid lengths per batch element
    lengths = jnp.array([[S], [5], [S], [3]], dtype=jnp.int32)
    mask = (jnp.arange(S)[None, :] < lengths).astype(jnp.float32)      # (B, S)

    aw, aw_ln = bahdanau_attention(enc, dec_last, mask, params)
    aw = jax.block_until_ready(aw)
    aw_ln = jax.block_until_ready(aw_ln)

    aw_ref, aw_ln_ref = reference_forward(enc, dec_last, mask, params)
    assert jnp.allclose(aw, aw_ref, atol=1e-5, rtol=1e-5)
    assert jnp.allclose(aw_ln, aw_ln_ref, atol=1e-4, rtol=1e-4)

    print("KERNEL_OK")
</pallas_src>

<mosaic_0001>
module attributes {stable_mosaic.version = 11 : i64} {
  func.func @_bahdanau_kernel(%arg0: i32, %arg1: memref<2x8x32xf32, #tpu.memory_space<vmem>>, %arg2: memref<2x1x32xf32, #tpu.memory_space<vmem>>, %arg3: memref<2x1x8xf32, #tpu.memory_space<vmem>>, %arg4: memref<2x1x8xf32, #tpu.memory_space<vmem>>, %arg5: memref<32x64xf32, #tpu.memory_space<vmem>>, %arg6: memref<32x32xf32, #tpu.memory_space<vmem>>, %arg7: memref<32x32xf32, #tpu.memory_space<vmem>>, %arg8: memref<1x32xf32, #tpu.memory_space<vmem>>, %arg9: memref<1x32xf32, #tpu.memory_space<vmem>>, %arg10: memref<2x1x8xf32, #tpu.memory_space<vmem>>, %arg11: memref<2x1x8xf32, #tpu.memory_space<vmem>>) attributes {dimension_semantics = [#tpu.dimension_semantics<parallel>], iteration_bounds = array<i64: 2>, scalar_prefetch = 0 : i64, scratch_operands = 0 : i64, tpu.core_type = #tpu.core_type<tc>, window_params = [{transform_indices = @transform_0, window_bounds = array<i64: 2, 8, 32>}, {transform_indices = @transform_1, window_bounds = array<i64: 2, 1, 32>}, {transform_indices = @transform_2, window_bounds = array<i64: 2, 1, 8>}, {transform_indices = @transform_3, window_bounds = array<i64: 2, 1, 8>}, {pipeline_mode = #tpu.pipeline_mode<synchronous>, transform_indices = @transform_4, window_bounds = array<i64: 32, 64>}, {pipeline_mode = #tpu.pipeline_mode<synchronous>, transform_indices = @transform_5, window_bounds = array<i64: 32, 32>}, {pipeline_mode = #tpu.pipeline_mode<synchronous>, transform_indices = @transform_6, window_bounds = array<i64: 32, 32>}, {pipeline_mode = #tpu.pipeline_mode<synchronous>, transform_indices = @transform_7, window_bounds = array<i64: 1, 32>}, {pipeline_mode = #tpu.pipeline_mode<synchronous>, transform_indices = @transform_8, window_bounds = array<i64: 1, 32>}, {transform_indices = @transform_9, window_bounds = array<i64: 2, 1, 8>}, {transform_indices = @transform_10, window_bounds = array<i64: 2, 1, 8>}]} {
    %c0 = arith.constant 0 : index
    %c0_0 = arith.constant 0 : index
    %c0_1 = arith.constant 0 : index
    %0 = vector.load %arg1[%c0, %c0_0, %c0_1] : memref<2x8x32xf32, #tpu.memory_space<vmem>>, vector<2x8x32xf32>
    %c0_2 = arith.constant 0 : index
    %c0_3 = arith.constant 0 : index
    %c0_4 = arith.constant 0 : index
    %1 = vector.load %arg2[%c0_2, %c0_3, %c0_4] : memref<2x1x32xf32, #tpu.memory_space<vmem>>, vector<2x1x32xf32>
    %2 = vector.shape_cast %1 : vector<2x1x32xf32> to vector<2x32xf32>
    %c0_5 = arith.constant 0 : index
    %c0_6 = arith.constant 0 : index
    %c0_7 = arith.constant 0 : index
    %3 = vector.load %arg3[%c0_5, %c0_6, %c0_7] : memref<2x1x8xf32, #tpu.memory_space<vmem>>, vector<2x1x8xf32>
    %4 = vector.shape_cast %3 : vector<2x1x8xf32> to vector<2x8xf32>
    %c0_8 = arith.constant 0 : index
    %c0_9 = arith.constant 0 : index
    %c0_10 = arith.constant 0 : index
    %5 = vector.load %arg4[%c0_8, %c0_9, %c0_10] : memref<2x1x8xf32, #tpu.memory_space<vmem>>, vector<2x1x8xf32>
    %6 = vector.shape_cast %5 : vector<2x1x8xf32> to vector<2x8xf32>
    %7 = vector.shape_cast %0 : vector<2x8x32xf32> to vector<16x32xf32>
    %c0_11 = arith.constant 0 : index
    %c0_12 = arith.constant 0 : index
    %8 = vector.load %arg5[%c0_11, %c0_12] : memref<32x64xf32, #tpu.memory_space<vmem>>, vector<32x64xf32>
    %cst = arith.constant dense<0.000000e+00> : vector<16x64xf32>
    %9 = tpu.matmul %7, %8, %cst {dimension_numbers = #tpu.dot_dimension_numbers<[1], [0], [0], [1], [0, 0, 1, 1], [], []>} : vector<16x32xf32>, vector<32x64xf32>, vector<16x64xf32> -> vector<16x64xf32>
    %10 = vector.shape_cast %9 : vector<16x64xf32> to vector<2x8x64xf32>
    %11 = vector.extract_strided_slice %10 {offsets = [0, 0, 0], sizes = [2, 8, 32], strides = [1, 1, 1]} : vector<2x8x64xf32> to vector<2x8x32xf32>
    %12 = vector.extract_strided_slice %10 {offsets = [0, 0, 32], sizes = [2, 8, 32], strides = [1, 1, 1]} : vector<2x8x64xf32> to vector<2x8x32xf32>
    %c0_13 = arith.constant 0 : index
    %c0_14 = arith.constant 0 : index
    %13 = vector.load %arg6[%c0_13, %c0_14] : memref<32x32xf32, #tpu.memory_space<vmem>>, vector<32x32xf32>
    %cst_15 = arith.constant dense<0.000000e+00> : vector<2x32xf32>
    %14 = tpu.matmul %2, %13, %cst_15 {dimension_numbers = #tpu.dot_dimension_numbers<[1], [0], [0], [1], [0, 0, 1, 1], [], []>} : vector<2x32xf32>, vector<32x32xf32>, vector<2x32xf32> -> vector<2x32xf32>
    %15 = vector.shape_cast %14 : vector<2x32xf32> to vector<2x1x32xf32>
    %16 = vector.broadcast %15 : vector<2x1x32xf32> to vector<2x8x32xf32>
    %17 = arith.addf %11, %16 : vector<2x8x32xf32>
    %18 = math.tanh %17 : vector<2x8x32xf32>
    %c0_16 = arith.constant 0 : index
    %c0_17 = arith.constant 0 : index
    %19 = vector.load %arg8[%c0_16, %c0_17] : memref<1x32xf32, #tpu.memory_space<vmem>>, vector<1x32xf32>
    %20 = vector.shape_cast %19 : vector<1x32xf32> to vector<1x1x32xf32>
    %21 = vector.broadcast %20 : vector<1x1x32xf32> to vector<2x8x32xf32>
    %22 = arith.mulf %18, %21 : vector<2x8x32xf32>
    %cst_18 = arith.constant dense<0.000000e+00> : vector<2x8xf32>
    %23 = vector.multi_reduction <add>, %22, %cst_18 [2] : vector<2x8x32xf32> to vector<2x8xf32>
    %24 = arith.addf %23, %4 : vector<2x8xf32>
    %cst_19 = arith.constant dense<0xFF800000> : vector<2xf32>
    %25 = vector.multi_reduction <maximumf>, %24, %cst_19 [1] : vector<2x8xf32> to vector<2xf32>
    %26 = vector.shape_cast %25 : vector<2xf32> to vector<2x1xf32>
    %27 = vector.broadcast %26 : vector<2x1xf32> to vector<2x8xf32>
    %28 = arith.subf %24, %27 : vector<2x8xf32>
    %29 = math.exp %28 : vector<2x8xf32>
    %cst_20 = arith.constant dense<0.000000e+00> : vector<2xf32>
    %30 = vector.multi_reduction <add>, %29, %cst_20 [1] : vector<2x8xf32> to vector<2xf32>
    %31 = vector.shape_cast %30 : vector<2xf32> to vector<2x1xf32>
    %32 = tpu.reciprocal %31 : vector<2x1xf32> -> vector<2x1xf32>
    %33 = vector.broadcast %32 : vector<2x1xf32> to vector<2x8xf32>
    %34 = arith.mulf %29, %33 : vector<2x8xf32>
    %35 = vector.shape_cast %34 : vector<2x8xf32> to vector<2x1x8xf32>
    "tpu.trace_start"() <{level = 10 : i32, message = "bqs,bsh->bqh"}> : () -> ()
    %cst_21 = arith.constant dense<0.000000e+00> : vector<2x1x32xf32>
    %36 = tpu.matmul %35, %0, %cst_21 {dimension_numbers = #tpu.dot_dimension_numbers<[2], [1], [1], [2], [0, 0, 0, 1, 1, 2], [0], [0]>} : vector<2x1x8xf32>, vector<2x8x32xf32>, vector<2x1x32xf32> -> vector<2x1x32xf32>
    "tpu.trace_stop"() : () -> ()
    %37 = vector.shape_cast %36 : vector<2x1x32xf32> to vector<2x32xf32>
    %38 = arith.addf %37, %2 : vector<2x32xf32>
    %c0_22 = arith.constant 0 : index
    %c0_23 = arith.constant 0 : index
    %39 = vector.load %arg7[%c0_22, %c0_23] : memref<32x32xf32, #tpu.memory_space<vmem>>, vector<32x32xf32>
    %cst_24 = arith.constant dense<0.000000e+00> : vector<2x32xf32>
    %40 = tpu.matmul %38, %39, %cst_24 {dimension_numbers = #tpu.dot_dimension_numbers<[1], [0], [0], [1], [0, 0, 1, 1], [], []>} : vector<2x32xf32>, vector<32x32xf32>, vector<2x32xf32> -> vector<2x32xf32>
    %41 = vector.shape_cast %40 : vector<2x32xf32> to vector<2x1x32xf32>
    %42 = vector.broadcast %41 : vector<2x1x32xf32> to vector<2x8x32xf32>
    %43 = arith.addf %12, %42 : vector<2x8x32xf32>
    %44 = math.tanh %43 : vector<2x8x32xf32>
    %c0_25 = arith.constant 0 : index
    %c0_26 = arith.constant 0 : index
    %45 = vector.load %arg9[%c0_25, %c0_26] : memref<1x32xf32, #tpu.memory_space<vmem>>, vector<1x32xf32>
    %46 = vector.shape_cast %45 : vector<1x32xf32> to vector<1x1x32xf32>
    %47 = vector.broadcast %46 : vector<1x1x32xf32> to vector<2x8x32xf32>
    %48 = arith.mulf %44, %47 : vector<2x8x32xf32>
    %cst_27 = arith.constant dense<0.000000e+00> : vector<2x8xf32>
    %49 = vector.multi_reduction <add>, %48, %cst_27 [2] : vector<2x8x32xf32> to vector<2x8xf32>
    %50 = arith.addf %49, %6 : vector<2x8xf32>
    %cst_28 = arith.constant dense<0xFF800000> : vector<2xf32>
    %51 = vector.multi_reduction <maximumf>, %50, %cst_28 [1] : vector<2x8xf32> to vector<2xf32>
    %52 = vector.shape_cast %51 : vector<2xf32> to vector<2x1xf32>
    %53 = vector.broadcast %52 : vector<2x1xf32> to vector<2x8xf32>
    %54 = arith.subf %50, %53 : vector<2x8xf32>
    %55 = math.exp %54 : vector<2x8xf32>
    %cst_29 = arith.constant dense<0.000000e+00> : vector<2xf32>
    %56 = vector.multi_reduction <add>, %55, %cst_29 [1] : vector<2x8xf32> to vector<2xf32>
    %57 = vector.shape_cast %56 : vector<2xf32> to vector<2x1xf32>
    %58 = tpu.reciprocal %57 : vector<2x1xf32> -> vector<2x1xf32>
    %59 = vector.broadcast %58 : vector<2x1xf32> to vector<2x8xf32>
    %60 = arith.mulf %55, %59 : vector<2x8xf32>
    %61 = vector.shape_cast %60 : vector<2x8xf32> to vector<2x1x8xf32>
    %c0_30 = arith.constant 0 : index
    %c0_31 = arith.constant 0 : index
    %c0_32 = arith.constant 0 : index
    %62 = vector.load %arg10[%c0_30, %c0_31, %c0_32] : memref<2x1x8xf32, #tpu.memory_space<vmem>>, vector<2x1x8xf32>
    tpu.vector_store %arg10[%c0_30, %c0_31, %c0_32], %61 {strides = array<i32>} : memref<2x1x8xf32, #tpu.memory_space<vmem>>, vector<2x1x8xf32>,
    %63 = math.log %57 : vector<2x1xf32>
    %64 = vector.broadcast %63 : vector<2x1xf32> to vector<2x8xf32>
    %65 = arith.subf %54, %64 : vector<2x8xf32>
    %66 = vector.shape_cast %65 : vector<2x8xf32> to vector<2x1x8xf32>
    %c0_33 = arith.constant 0 : index
    %c0_34 = arith.constant 0 : index
    %c0_35 = arith.constant 0 : index
    %67 = vector.load %arg11[%c0_33, %c0_34, %c0_35] : memref<2x1x8xf32, #tpu.memory_space<vmem>>, vector<2x1x8xf32>
    tpu.vector_store %arg11[%c0_33, %c0_34, %c0_35], %66 {strides = array<i32>} : memref<2x1x8xf32, #tpu.memory_space<vmem>>, vector<2x1x8xf32>,
    return
  }
  func.func @transform_0(%arg0: i32) -> (i32, i32, i32) {
    %c0_i32 = arith.constant 0 : i32
    %c0_i32_0 = arith.constant 0 : i32
    %c0_i32_1 = arith.constant 0 : i32
    return %arg0, %c0_i32, %c0_i32_0 : i32, i32, i32
  }
  func.func @transform_1(%arg0: i32) -> (i32, i32, i32) {
    %c0_i32 = arith.constant 0 : i32
    %c0_i32_0 = arith.constant 0 : i32
    %c0_i32_1 = arith.constant 0 : i32
    return %arg0, %c0_i32, %c0_i32_0 : i32, i32, i32
  }
  func.func @transform_2(%arg0: i32) -> (i32, i32, i32) {
    %c0_i32 = arith.constant 0 : i32
    %c0_i32_0 = arith.constant 0 : i32
    %c0_i32_1 = arith.constant 0 : i32
    return %arg0, %c0_i32, %c0_i32_0 : i32, i32, i32
  }
  func.func @transform_3(%arg0: i32) -> (i32, i32, i32) {
    %c0_i32 = arith.constant 0 : i32
    %c0_i32_0 = arith.constant 0 : i32
    %c0_i32_1 = arith.constant 0 : i32
    return %arg0, %c0_i32, %c0_i32_0 : i32, i32, i32
  }
  func.func @transform_4(%arg0: i32) -> (i32, i32) {
    %c0_i32 = arith.constant 0 : i32
    %c0_i32_0 = arith.constant 0 : i32
    %c0_i32_1 = arith.constant 0 : i32
    return %c0_i32, %c0_i32_0 : i32, i32
  }
  func.func @transform_5(%arg0: i32) -> (i32, i32) {
    %c0_i32 = arith.constant 0 : i32
    %c0_i32_0 = arith.constant 0 : i32
    %c0_i32_1 = arith.constant 0 : i32
    return %c0_i32, %c0_i32_0 : i32, i32
  }
  func.func @transform_6(%arg0: i32) -> (i32, i32) {
    %c0_i32 = arith.constant 0 : i32
    %c0_i32_0 = arith.constant 0 : i32
    %c0_i32_1 = arith.constant 0 : i32
    return %c0_i32, %c0_i32_0 : i32, i32
  }
  func.func @transform_7(%arg0: i32) -> (i32, i32) {
    %c0_i32 = arith.constant 0 : i32
    %c0_i32_0 = arith.constant 0 : i32
    %c0_i32_1 = arith.constant 0 : i32
    return %c0_i32, %c0_i32_0 : i32, i32
  }
  func.func @transform_8(%arg0: i32) -> (i32, i32) {
    %c0_i32 = arith.constant 0 : i32
    %c0_i32_0 = arith.constant 0 : i32
    %c0_i32_1 = arith.constant 0 : i32
    return %c0_i32, %c0_i32_0 : i32, i32
  }
  func.func @transform_9(%arg0: i32) -> (i32, i32, i32) {
    %c0_i32 = arith.constant 0 : i32
    %c0_i32_0 = arith.constant 0 : i32
    %c0_i32_1 = arith.constant 0 : i32
    return %arg0, %c0_i32, %c0_i32_0 : i32, i32, i32
  }
  func.func @transform_10(%arg0: i32) -> (i32, i32, i32) {
    %c0_i32 = arith.constant 0 : i32
    %c0_i32_0 = arith.constant 0 : i32
    %c0_i32_1 = arith.constant 0 : i32
    return %arg0, %c0_i32, %c0_i32_0 : i32, i32, i32
  }
}

</mosaic_0001>

<llo_original>
// kernel: tpu_custom_call.1
$region0: #{tpu_custom_call.1}
  #allocation0 [shape = 'u32[]', space=smem, size = 0x4, offset = 0x4, fixed_abs, tag = 'smem constant byte address 0x4 - core index']
  #allocation1 [shape = 'u32[144,128]{1,0:T(1,128)}', space=vmem, size = 0x12000, scoped, tag = 'internal scratch']
  %s0 = inlined_call_operand.hbm [shape: f32[4,8,32], index: 0, kind: input, shape index: {}]
  %s1 = inlined_call_operand.hbm [shape: f32[4,1,32], index: 1, kind: input, shape index: {}]
  %s2 = inlined_call_operand.vmem [shape: f32[4,1,8], index: 2, kind: input, shape index: {}]
  %s3 = inlined_call_operand.vmem [shape: f32[4,1,8], index: 3, kind: input, shape index: {}]
  %s4 = inlined_call_operand.hbm [shape: f32[32,64], index: 4, kind: input, shape index: {}]
  %s5 = inlined_call_operand.hbm [shape: f32[32,32], index: 5, kind: input, shape index: {}]
  %s6 = inlined_call_operand.hbm [shape: f32[32,32], index: 6, kind: input, shape index: {}]
  %s7 = inlined_call_operand.vmem [shape: f32[1,32], index: 7, kind: input, shape index: {}]
  %s8 = inlined_call_operand.vmem [shape: f32[1,32], index: 8, kind: input, shape index: {}]
  %s9 = inlined_call_operand.hbm [shape: f32[4,1,8], index: 9, kind: output, shape index: {0}]
  %s10 = inlined_call_operand.hbm [shape: f32[4,1,8], index: 10, kind: output, shape index: {1}]
  %11 = xla_tuple %s9, %s10
  %s12 = sld [smem:[#allocation0]]
  $region97: #{tpu_custom_call.1} parent=0
    _
  %s14 = ssub.s32 1, %s12
  %s15 = scalar_select 0, %s14, %s12
  $region1: #{tpu_custom_call.1} parent=0
    #allocation2 [shape = 'u8[16384]{0}', space=vmem, size = 0x4000, scoped, tag = 'input window, operand 0']
    #allocation3 [shape = 's32[2]{0}', space=sflag, size = 0x8, scoped, tag = 'scoped memory for tpu_custom_call.1']
    #allocation4 [shape = 's32[2]{0}', space=sflag, size = 0x8, scoped, tag = 'scoped memory for tpu_custom_call.1']
    #allocation5 [shape = 'u8[2048]{0}', space=vmem, size = 0x800, scoped, tag = 'input window, operand 1']
    #allocation6 [shape = 's32[2]{0}', space=sflag, size = 0x8, scoped, tag = 'scoped memory for tpu_custom_call.1']
    #allocation7 [shape = 'u8[16384]{0}', space=vmem, size = 0x4000, scoped, tag = 'input window, operand 4, single buffered']
    #allocation8 [shape = 'u8[16384]{0}', space=vmem, size = 0x4000, scoped, tag = 'input window, operand 5, single buffered']
    #allocation9 [shape = 's32[1]{0}', space=sflag, size = 0x4, scoped, tag = 'scoped memory for tpu_custom_call.1']
    #allocation10 [shape = 'u8[16384]{0}', space=vmem, size = 0x4000, scoped, tag = 'input window, operand 6, single buffered']
    #allocation11 [shape = 'u8[2048]{0}', space=vmem, size = 0x800, scoped, tag = 'output window, operand 0']
    #allocation12 [shape = 'u8[2048]{0}', space=vmem, size = 0x800, scoped, tag = 'output window, operand 1']
    #allocation13 [shape = 's32[2]{0}', space=sflag, size = 0x8, scoped, tag = 'scoped memory for tpu_custom_call.1']
    %16 = vsyncpa [#allocation3], 0
    %s17 = scalar_lea.sflag [#allocation3], 1
    %18 = vsyncpa %s17, 0
    %19 = vsyncpa [#allocation6], 0
    %s20 = scalar_lea.sflag [#allocation6], 1
    %21 = vsyncpa %s20, 0
    %22 = vsyncpa [#allocation9], 0
    %23 = vsyncpa [#allocation4], 0
    %s24 = scalar_lea.sflag [#allocation4], 1
    %25 = vsyncpa %s24, 0
    %26 = vsyncpa [#allocation13], 0
    %s27 = scalar_lea.sflag [#allocation13], 1
    %28 = vsyncpa %s27, 0
    loop: start=0, step=1, limit=4
    $region2: #{tpu_custom_call.1} parent=1 // loop_pre_header
      _
    $region3: #{tpu_custom_call.1} parent=1 // loop_header
      %s30 = sphi 0, %s34
      %p31 = scmp.ge.s32.totalorder %s30, 4
      %s40 = sphi 0, %s42
      %s43 = sphi 0, %s40
      %s44 = sphi 0, %s43
      %s60 = sphi 0, %s44
      %s66 = sphi 0, %s68
      %s69 = sphi 0, %s66
      %s70 = sphi 0, %s69
      %s86 = sphi 0, %s70
      %s92 = sphi 0, %s94
      %s95 = sphi 0, %s92
      %s96 = sphi 0, %s95
      %s112 = sphi 0, %s96
      %s118 = sphi 0, %s120
      %s121 = sphi 0, %s118
      %s122 = sphi 0, %s121
      %s138 = sphi 0, %s122
      %s142 = sphi 0, %s142
      %s144 = sphi 0, %s142
      %s145 = sphi 0, %s144
      %s159 = sphi 0, %s145
      %s163 = sphi 0, %s163
      %s165 = sphi 0, %s163
      %s166 = sphi 0, %s165
      %s180 = sphi 0, %s166
      %s184 = sphi 0, %s184
      %s186 = sphi 0, %s184
      %s187 = sphi 0, %s186
      %s201 = sphi 0, %s187
      %s205 = sphi 0, %s205
      %s207 = sphi 0, %s205
      %s208 = sphi 0, %s207
      %s222 = sphi 0, %s208
      %s226 = sphi 0, %s226
      %s228 = sphi 0, %s226
      %s229 = sphi 0, %s228
      %s243 = sphi 0, %s229
      %s249 = sphi 0, %s251
      %s252 = sphi 0, %s249
      %s253 = sphi 0, %s252
      %s269 = sphi 0, %s253
      %s275 = sphi 0, %s277
      %s278 = sphi 0, %s275
      %s279 = sphi 0, %s278
      %s295 = sphi 0, %s279
    $region4: #{tpu_custom_call.1} parent=1 // loop_header_branch
      %33 = sbr.rel (%p31) target = $region8
    $region5: #{tpu_custom_call.1} parent=1 // loop_body
      %s35 = ssub.s32 %s30, 1
      %s36 = ssub.s32 %s30, 2
      %s37 = sadd.s32 %s30, 1
      %s38 = ssub.s32 %s30, %s37
      %p39 = scmp.eq.s32.totalorder %s38, 0
      %s41 = sadd.s32 %s40, 1
      %s42 = scalar_select %p39, %s40, %s41
      %p45 = pneg %p39
      %p46 = scmp.eq.s32.totalorder %s30, 1
      %p47 = por %p45, %p46
      %p48 = scmp.ne.s32.totalorder %s40, %s43
      %p49 = scmp.eq.s32.totalorder %s30, 0
      %p50 = por %p48, %p49
      %p51 = scmp.ne.s32.totalorder %s40, %s43
      %p52 = scmp.eq.s32.totalorder %s35, 1
      %p53 = por %p51, %p52
      %p54 = scmp.ne.s32.totalorder %s43, %s44
      %p55 = scmp.eq.s32.totalorder %s35, 0
      %p56 = por %p54, %p55
      %p57 = scmp.ne.s32.totalorder %s43, %s44
      %p58 = scmp.eq.s32.totalorder %s36, 1
      %p59 = por %p57, %p58
      %p61 = scmp.ne.s32.totalorder %s44, %s60
      %p62 = scmp.eq.s32.totalorder %s36, 0
      %p63 = por %p61, %p62
      %s64 = ssub.s32 %s30, %s37
      %p65 = scmp.eq.s32.totalorder %s64, 0
      %s67 = sadd.s32 %s66, 1
      %s68 = scalar_select %p65, %s66, %s67
      %p71 = pneg %p65
      %p72 = scmp.eq.s32.totalorder %s30, 1
      %p73 = por %p71, %p72
      %p74 = scmp.ne.s32.totalorder %s66, %s69
      %p75 = scmp.eq.s32.totalorder %s30, 0
      %p76 = por %p74, %p75
      %p77 = scmp.ne.s32.totalorder %s66, %s69
      %p78 = scmp.eq.s32.totalorder %s35, 1
      %p79 = por %p77, %p78
      %p80 = scmp.ne.s32.totalorder %s69, %s70
      %p81 = scmp.eq.s32.totalorder %s35, 0
      %p82 = por %p80, %p81
      %p83 = scmp.ne.s32.totalorder %s69, %s70
      %p84 = scmp.eq.s32.totalorder %s36, 1
      %p85 = por %p83, %p84
      %p87 = scmp.ne.s32.totalorder %s70, %s86
      %p88 = scmp.eq.s32.totalorder %s36, 0
      %p89 = por %p87, %p88
      %s90 = ssub.s32 %s30, %s37
      %p91 = scmp.eq.s32.totalorder %s90, 0
      %s93 = sadd.s32 %s92, 1
      %s94 = scalar_select %p91, %s92, %s93
      %p97 = pneg %p91
      %p98 = scmp.eq.s32.totalorder %s30, 1
      %p99 = por %p97, %p98
      %p100 = scmp.ne.s32.totalorder %s92, %s95
      %p101 = scmp.eq.s32.totalorder %s30, 0
      %p102 = por %p100, %p101
      %p103 = scmp.ne.s32.totalorder %s92, %s95
      %p104 = scmp.eq.s32.totalorder %s35, 1
      %p105 = por %p103, %p104
      %p106 = scmp.ne.s32.totalorder %s95, %s96
      %p107 = scmp.eq.s32.totalorder %s35, 0
      %p108 = por %p106, %p107
      %p109 = scmp.ne.s32.totalorder %s95, %s96
      %p110 = scmp.eq.s32.totalorder %s36, 1
      %p111 = por %p109, %p110
      %p113 = scmp.ne.s32.totalorder %s96, %s112
      %p114 = scmp.eq.s32.totalorder %s36, 0
      %p115 = por %p113, %p114
      %s116 = ssub.s32 %s30, %s37
      %p117 = scmp.eq.s32.totalorder %s116, 0
      %s119 = sadd.s32 %s118, 1
      %s120 = scalar_select %p117, %s118, %s119
      %p123 = pneg %p117
      %p124 = scmp.eq.s32.totalorder %s30, 1
      %p125 = por %p123, %p124
      %p126 = scmp.ne.s32.totalorder %s118, %s121
      %p127 = scmp.eq.s32.totalorder %s30, 0
      %p128 = por %p126, %p127
      %p129 = scmp.ne.s32.totalorder %s118, %s121
      %p130 = scmp.eq.s32.totalorder %s35, 1
      %p131 = por %p129, %p130
      %p132 = scmp.ne.s32.totalorder %s121, %s122
      %p133 = scmp.eq.s32.totalorder %s35, 0
      %p134 = por %p132, %p133
      %p135 = scmp.ne.s32.totalorder %s121, %s122
      %p136 = scmp.eq.s32.totalorder %s36, 1
      %p137 = por %p135, %p136
      %p139 = scmp.ne.s32.totalorder %s122, %s138
      %p140 = scmp.eq.s32.totalorder %s36, 0
      %p141 = por %p139, %p140
      %s143 = sadd.s32 %s142, 1
      %p146 = scmp.eq.s32.totalorder %s30, 1
      %p147 = scmp.ne.s32.totalorder %s142, %s144
      %p148 = scmp.eq.s32.totalorder %s30, 0
      %p149 = por %p147, %p148
      %p150 = scmp.ne.s32.totalorder %s142, %s144
      %p151 = scmp.eq.s32.totalorder %s35, 1
      %p152 = por %p150, %p151
      %p153 = scmp.ne.s32.totalorder %s144, %s145
      %p154 = scmp.eq.s32.totalorder %s35, 0
      %p155 = por %p153, %p154
      %p156 = scmp.ne.s32.totalorder %s144, %s145
      %p157 = scmp.eq.s32.totalorder %s36, 1
      %p158 = por %p156, %p157
      %p160 = scmp.ne.s32.totalorder %s145, %s159
      %p161 = scmp.eq.s32.totalorder %s36, 0
      %p162 = por %p160, %p161
      %s164 = sadd.s32 %s163, 1
      %p167 = scmp.eq.s32.totalorder %s30, 1
      %p168 = scmp.ne.s32.totalorder %s163, %s165
      %p169 = scmp.eq.s32.totalorder %s30, 0
      %p170 = por %p168, %p169
      %p171 = scmp.ne.s32.totalorder %s163, %s165
      %p172 = scmp.eq.s32.totalorder %s35, 1
      %p173 = por %p171, %p172
      %p174 = scmp.ne.s32.totalorder %s165, %s166
      %p175 = scmp.eq.s32.totalorder %s35, 0
      %p176 = por %p174, %p175
      %p177 = scmp.ne.s32.totalorder %s165, %s166
      %p178 = scmp.eq.s32.totalorder %s36, 1
      %p179 = por %p177, %p178
      %p181 = scmp.ne.s32.totalorder %s166, %s180
      %p182 = scmp.eq.s32.totalorder %s36, 0
      %p183 = por %p181, %p182
      %s185 = sadd.s32 %s184, 1
      %p188 = scmp.eq.s32.totalorder %s30, 1
      %p189 = scmp.ne.s32.totalorder %s184, %s186
      %p190 = scmp.eq.s32.totalorder %s30, 0
      %p191 = por %p189, %p190
      %p192 = scmp.ne.s32.totalorder %s184, %s186
      %p193 = scmp.eq.s32.totalorder %s35, 1
      %p194 = por %p192, %p193
      %p195 = scmp.ne.s32.totalorder %s186, %s187
      %p196 = scmp.eq.s32.totalorder %s35, 0
      %p197 = por %p195, %p196
      %p198 = scmp.ne.s32.totalorder %s186, %s187
      %p199 = scmp.eq.s32.totalorder %s36, 1
      %p200 = por %p198, %p199
      %p202 = scmp.ne.s32.totalorder %s187, %s201
      %p203 = scmp.eq.s32.totalorder %s36, 0
      %p204 = por %p202, %p203
      %s206 = sadd.s32 %s205, 1
      %p209 = scmp.eq.s32.totalorder %s30, 1
      %p210 = scmp.ne.s32.totalorder %s205, %s207
      %p211 = scmp.eq.s32.totalorder %s30, 0
      %p212 = por %p210, %p211
      %p213 = scmp.ne.s32.totalorder %s205, %s207
      %p214 = scmp.eq.s32.totalorder %s35, 1
      %p215 = por %p213, %p214
      %p216 = scmp.ne.s32.totalorder %s207, %s208
      %p217 = scmp.eq.s32.totalorder %s35, 0
      %p218 = por %p216, %p217
      %p219 = scmp.ne.s32.totalorder %s207, %s208
      %p220 = scmp.eq.s32.totalorder %s36, 1
      %p221 = por %p219, %p220
      %p223 = scmp.ne.s32.totalorder %s208, %s222
      %p224 = scmp.eq.s32.totalorder %s36, 0
      %p225 = por %p223, %p224
      %s227 = sadd.s32 %s226, 1
      %p230 = scmp.eq.s32.totalorder %s30, 1
      %p231 = scmp.ne.s32.totalorder %s226, %s228
      %p232 = scmp.eq.s32.totalorder %s30, 0
      %p233 = por %p231, %p232
      %p234 = scmp.ne.s32.totalorder %s226, %s228
      %p235 = scmp.eq.s32.totalorder %s35, 1
      %p236 = por %p234, %p235
      %p237 = scmp.ne.s32.totalorder %s228, %s229
      %p238 = scmp.eq.s32.totalorder %s35, 0
      %p239 = por %p237, %p238
      %p240 = scmp.ne.s32.totalorder %s228, %s229
      %p241 = scmp.eq.s32.totalorder %s36, 1
      %p242 = por %p240, %p241
      %p244 = scmp.ne.s32.totalorder %s229, %s243
      %p245 = scmp.eq.s32.totalorder %s36, 0
      %p246 = por %p244, %p245
      %s247 = ssub.s32 %s30, %s37
      %p248 = scmp.eq.s32.totalorder %s247, 0
      %s250 = sadd.s32 %s249, 1
      %s251 = scalar_select %p248, %s249, %s250
      %p254 = pneg %p248
      %p255 = scmp.eq.s32.totalorder %s30, 1
      %p256 = por %p254, %p255
      %p257 = scmp.ne.s32.totalorder %s249, %s252
      %p258 = scmp.eq.s32.totalorder %s30, 0
      %p259 = por %p257, %p258
      %p260 = scmp.ne.s32.totalorder %s249, %s252
      %p261 = scmp.eq.s32.totalorder %s35, 1
      %p262 = por %p260, %p261
      %p263 = scmp.ne.s32.totalorder %s252, %s253
      %p264 = scmp.eq.s32.totalorder %s35, 0
      %p265 = por %p263, %p264
      %p266 = scmp.ne.s32.totalorder %s252, %s253
      %p267 = scmp.eq.s32.totalorder %s36, 1
      %p268 = por %p266, %p267
      %p270 = scmp.ne.s32.totalorder %s253, %s269
      %p271 = scmp.eq.s32.totalorder %s36, 0
      %p272 = por %p270, %p271
      %s273 = ssub.s32 %s30, %s37
      %p274 = scmp.eq.s32.totalorder %s273, 0
      %s276 = sadd.s32 %s275, 1
      %s277 = scalar_select %p274, %s275, %s276
      %p280 = pneg %p274
      %p281 = scmp.eq.s32.totalorder %s30, 1
      %p282 = por %p280, %p281
      %p283 = scmp.ne.s32.totalorder %s275, %s278
      %p284 = scmp.eq.s32.totalorder %s30, 0
      %p285 = por %p283, %p284
      %p286 = scmp.ne.s32.totalorder %s275, %s278
      %p287 = scmp.eq.s32.totalorder %s35, 1
      %p288 = por %p286, %p287
      %p289 = scmp.ne.s32.totalorder %s278, %s279
      %p290 = scmp.eq.s32.totalorder %s35, 0
      %p291 = por %p289, %p290
      %p292 = scmp.ne.s32.totalorder %s278, %s279
      %p293 = scmp.eq.s32.totalorder %s36, 1
      %p294 = por %p292, %p293
      %p296 = scmp.ne.s32.totalorder %s279, %s295
      %p297 = scmp.eq.s32.totalorder %s36, 0
      %p298 = por %p296, %p297
      %p299 = scmp.le.s32.totalorder 1, %s30
      %p300 = scmp.lt.s32.totalorder %s30, 3
      %p301 = pnand %p299, %p300
      %p302 = pneg %p301
      // Predicated region
      $region9: #{tpu_custom_call.1} parent=5 // pred_check
        _
      $region10: #{tpu_custom_call.1} parent=5 // pred_check_branch
        %304 = sbr.rel (%p301) target = $region12
      $region11: #{tpu_custom_call.1} parent=5 // pred_region
        %s305 = ssub.s32 %s30, 1
        // Predicated region
        $region13: #{tpu_custom_call.1} parent=11 // pred_check
          %p306 = pneg %p155
        $region14: #{tpu_custom_call.1} parent=11 // pred_check_branch
          %308 = sbr.rel (%p306) target = $region16
        $region15: #{tpu_custom_call.1} parent=11 // pred_region
          %s310 = ssub.s32 512, 512
          %311 = vsyncadd [#allocation6], %s310
          %s312 = sshll.u32 [#allocation7], 4
          %s313 = int_to_ptr.vmem [resolvable:$true] %s312
          %318 = dma.hbm_to_vmem [thread:$0]  %s4, 512, %s313, [#allocation6], 128, 128, 8
        $region16: #{tpu_custom_call.1} parent=11 // pred_fallthru
          _
        // Predicated region
        $region17: #{tpu_custom_call.1} parent=11 // pred_check
          %p319 = pneg %p176
        $region18: #{tpu_custom_call.1} parent=11 // pred_check_branch
          %321 = sbr.rel (%p319) target = $region20
        $region19: #{tpu_custom_call.1} parent=11 // pred_region
          %s323 = ssub.s32 512, 512
          %324 = vsyncadd [#allocation9], %s323
          %s325 = sshll.u32 [#allocation8], 4
          %s326 = int_to_ptr.vmem [resolvable:$true] %s325
          %331 = dma.hbm_to_vmem [thread:$0]  %s5, 512, %s326, [#allocation9], 128, 128, 8
        $region20: #{tpu_custom_call.1} parent=11 // pred_fallthru
          _
        // Predicated region
        $region21: #{tpu_custom_call.1} parent=11 // pred_check
          %p332 = pneg %p197
        $region22: #{tpu_custom_call.1} parent=11 // pred_check_branch
          %334 = sbr.rel (%p332) target = $region24
        $region23: #{tpu_custom_call.1} parent=11 // pred_region
          %s336 = ssub.s32 512, 512
          %337 = vsyncadd [#allocation9], %s336
          %s338 = sshll.u32 [#allocation10], 4
          %s339 = int_to_ptr.vmem [resolvable:$true] %s338
          %344 = dma.hbm_to_vmem [thread:$0]  %s6, 512, %s339, [#allocation9], 128, 128, 8
        $region24: #{tpu_custom_call.1} parent=11 // pred_fallthru
          _
        // Predicated region
        $region25: #{tpu_custom_call.1} parent=11 // pred_check
          %p345 = pneg %p218
        $region26: #{tpu_custom_call.1} parent=11 // pred_check_branch
          %347 = sbr.rel (%p345) target = $region28
        $region27: #{tpu_custom_call.1} parent=11 // pred_region
          _
        $region28: #{tpu_custom_call.1} parent=11 // pred_fallthru
          _
        // Predicated region
        $region29: #{tpu_custom_call.1} parent=11 // pred_check
          %p348 = pneg %p239
        $region30: #{tpu_custom_call.1} parent=11 // pred_check_branch
          %350 = sbr.rel (%p348) target = $region32
        $region31: #{tpu_custom_call.1} parent=11 // pred_region
          _
        $region32: #{tpu_custom_call.1} parent=11 // pred_fallthru
          _
      $region12: #{tpu_custom_call.1} parent=5 // pred_fallthru
        _
      %p351 = scmp.lt.s32.totalorder %s30, 2
      // Predicated region
      $region33: #{tpu_custom_call.1} parent=5 // pred_check
        %p352 = pneg %p351
      $region34: #{tpu_custom_call.1} parent=5 // pred_check_branch
        %354 = sbr.rel (%p352) target = $region36
      $region35: #{tpu_custom_call.1} parent=5 // pred_region
        // Predicated region
        $region37: #{tpu_custom_call.1} parent=35 // pred_check
          %p355 = pneg %p50
        $region38: #{tpu_custom_call.1} parent=35 // pred_check_branch
          %357 = sbr.rel (%p355) target = $region40
        $region39: #{tpu_custom_call.1} parent=35 // pred_region
          %s358 = sand.u32 %s40, 1
          %s359 = scalar_lea.sflag [#allocation3], %s358
          %s360 = sand.u32 %s40, 1
          %s361 = smul.addr %s360, 16
          %s362 = scalar_lea.vmem [#allocation2], %s361
          %s363 = smul.u32 2, %s30
          %s365 = ssub.s32 256, 256
          %366 = vsyncadd %s359, %s365
          %s367 = smul.addr %s363, 128
          %s368 = scalar_lea.hbm %s0, %s367
          %s369 = sshll.u32 %s362, 4
          %s370 = int_to_ptr.vmem [resolvable:$true] %s369
          %375 = dma.hbm_to_vmem [thread:$0]  %s368, 256, %s370, %s359, 128, 128, 8
        $region40: #{tpu_custom_call.1} parent=35 // pred_fallthru
          _
        // Predicated region
        $region41: #{tpu_custom_call.1} parent=35 // pred_check
          %p376 = pneg %p76
        $region42: #{tpu_custom_call.1} parent=35 // pred_check_branch
          %378 = sbr.rel (%p376) target = $region44
        $region43: #{tpu_custom_call.1} parent=35 // pred_region
          %s379 = sand.u32 %s30, 1
          %s380 = scalar_lea.sflag [#allocation6], %s379
          %s381 = sand.u32 %s66, 1
          %s382 = smul.addr %s381, 2
          %s383 = scalar_lea.vmem [#allocation5], %s382
          %s384 = smul.u32 2, %s30
          %s386 = ssub.s32 32, 32
          %387 = vsyncadd %s380, %s386
          %s388 = smul.addr %s384, 16
          %s389 = scalar_lea.hbm %s1, %s388
          %s390 = sshll.u32 %s383, 4
          %s391 = int_to_ptr.vmem [resolvable:$true] %s390
          %396 = dma.hbm_to_vmem [thread:$0]  %s389, 32, %s391, %s380, 16, 16, 1
        $region44: #{tpu_custom_call.1} parent=35 // pred_fallthru
          _
        // Predicated region
        $region45: #{tpu_custom_call.1} parent=35 // pred_check
          %p397 = pneg %p102
        $region46: #{tpu_custom_call.1} parent=35 // pred_check_branch
          %399 = sbr.rel (%p397) target = $region48
        $region47: #{tpu_custom_call.1} parent=35 // pred_region
          %s400 = smul.u32 2, %s30
          %p401 = scmp.lt.s32.totalorder %s400, 3
          %s402 = scalar_select %p401, %s400, 3
          %s403 = scalar_lea.vmem %s2, %s402
          %s404 = smul.u32 2, %s30
        $region48: #{tpu_custom_call.1} parent=35 // pred_fallthru
          _
        // Predicated region
        $region49: #{tpu_custom_call.1} parent=35 // pred_check
          %p405 = pneg %p128
        $region50: #{tpu_custom_call.1} parent=35 // pred_check_branch
          %407 = sbr.rel (%p405) target = $region52
        $region51: #{tpu_custom_call.1} parent=35 // pred_region
          %s408 = smul.u32 2, %s30
          %p409 = scmp.lt.s32.totalorder %s408, 3
          %s410 = scalar_select %p409, %s408, 3
          %s411 = scalar_lea.vmem %s3, %s410
          %s412 = smul.u32 2, %s30
        $region52: #{tpu_custom_call.1} parent=35 // pred_fallthru
          _
      $region36: #{tpu_custom_call.1} parent=5 // pred_fallthru
        _
      %p413 = scmp.le.s32.totalorder 1, %s30
      %p414 = scmp.lt.s32.totalorder %s30, 3
      %p415 = pnand %p413, %p414
      %p416 = pneg %p415
      // Predicated region
      $region53: #{tpu_custom_call.1} parent=5 // pred_check
        _
      $region54: #{tpu_custom_call.1} parent=5 // pred_check_branch
        %418 = sbr.rel (%p415) target = $region56
      $region55: #{tpu_custom_call.1} parent=5 // pred_region
        %s419 = ssub.s32 %s30, 1
        %s420 = sand.u32 %s43, 1
        %s421 = scalar_lea.sflag [#allocation3], %s420
        %s422 = sand.u32 %s43, 1
        %s423 = smul.addr %s422, 16
        %s424 = scalar_lea.vmem [#allocation2], %s423
        // Predicated region
        $region57: #{tpu_custom_call.1} parent=55 // pred_check
          %p425 = pneg %p56
        $region58: #{tpu_custom_call.1} parent=55 // pred_check_branch
          %427 = sbr.rel (%p425) target = $region60
        $region59: #{tpu_custom_call.1} parent=55 // pred_region
          %428 = dma.done %s421, 256
        $region60: #{tpu_custom_call.1} parent=55 // pred_fallthru
          _
        %s429 = sand.u32 %s35, 1
        %s430 = scalar_lea.sflag [#allocation6], %s429
        %s431 = sand.u32 %s69, 1
        %s432 = smul.addr %s431, 2
        %s433 = scalar_lea.vmem [#allocation5], %s432
        // Predicated region
        $region61: #{tpu_custom_call.1} parent=55 // pred_check
          %p434 = pneg %p82
        $region62: #{tpu_custom_call.1} parent=55 // pred_check_branch
          %436 = sbr.rel (%p434) target = $region64
        $region63: #{tpu_custom_call.1} parent=55 // pred_region
          %437 = dma.done %s430, 32
        $region64: #{tpu_custom_call.1} parent=55 // pred_fallthru
          _
        // Predicated region
        $region65: #{tpu_custom_call.1} parent=55 // pred_check
          %p438 = pneg %p155
        $region66: #{tpu_custom_call.1} parent=55 // pred_check_branch
          %440 = sbr.rel (%p438) target = $region68
        $region67: #{tpu_custom_call.1} parent=55 // pred_region
          %441 = dma.done [#allocation6], 512
        $region68: #{tpu_custom_call.1} parent=55 // pred_fallthru
          _
        // Predicated region
        $region69: #{tpu_custom_call.1} parent=55 // pred_check
          %p442 = pneg %p176
        $region70: #{tpu_custom_call.1} parent=55 // pred_check_branch
          %444 = sbr.rel (%p442) target = $region72
        $region71: #{tpu_custom_call.1} parent=55 // pred_region
          %445 = dma.done [#allocation9], 512
        $region72: #{tpu_custom_call.1} parent=55 // pred_fallthru
          _
        // Predicated region
        $region73: #{tpu_custom_call.1} parent=55 // pred_check
          %p446 = pneg %p197
        $region74: #{tpu_custom_call.1} parent=55 // pred_check_branch
          %448 = sbr.rel (%p446) target = $region76
        $region75: #{tpu_custom_call.1} parent=55 // pred_region
          %449 = dma.done [#allocation9], 512
        $region76: #{tpu_custom_call.1} parent=55 // pred_fallthru
          _
        %s450 = sand.u32 %s43, 1
        %s451 = scalar_lea.sflag [#allocation3], %s450
        %s452 = sand.u32 %s43, 1
        %s453 = smul.addr %s452, 16
        %s454 = scalar_lea.vmem [#allocation2], %s453
        %p455 = pneg %p56
        %p456 = pneg %p53
        %s457 = sand.u32 %s35, 1
        %s458 = scalar_lea.sflag [#allocation6], %s457
        %s459 = sand.u32 %s69, 1
        %s460 = smul.addr %s459, 2
        %s461 = scalar_lea.vmem [#allocation5], %s460
        %p462 = pneg %p82
        %p463 = pneg %p79
        %s464 = smul.u32 2, %s35
        %p465 = scmp.lt.s32.totalorder %s464, 3
        %s466 = scalar_select %p465, %s464, 3
        %s467 = scalar_lea.vmem %s2, %s466
        %p468 = pneg %p108
        %p469 = pneg %p105
        %s470 = smul.u32 2, %s35
        %p471 = scmp.lt.s32.totalorder %s470, 3
        %s472 = scalar_select %p471, %s470, 3
        %s473 = scalar_lea.vmem %s3, %s472
        %p474 = pneg %p134
        %p475 = pneg %p131
        %p476 = pneg %p155
        %p477 = pneg %p152
        %p478 = pneg %p176
        %p479 = pneg %p173
        %p480 = pneg %p197
        %p481 = pneg %p194
        %p482 = pneg %p218
        %p483 = pneg %p215
        %p484 = pneg %p239
        %p485 = pneg %p236
        %p486 = pneg %p265
        %p487 = pneg %p262
        %s488 = sand.u32 %s252, 1
        %s489 = scalar_lea.sflag [#allocation4], %s488
        %s490 = sand.u32 %s252, 1
        %s491 = smul.addr %s490, 2
        %s492 = scalar_lea.vmem [#allocation11], %s491
        %p493 = pneg %p291
        %p494 = pneg %p288
        %s495 = sand.u32 %s278, 1
        %s496 = scalar_lea.sflag [#allocation13], %s495
        %s497 = sand.u32 %s278, 1
        %s498 = smul.addr %s497, 2
        %s499 = scalar_lea.vmem [#allocation12], %s498
        %s500 = smul.u32 2, %s35
        %s501 = smul.u32 2, %s35
        %s502 = smul.u32 2, %s35
        %p503 = scmp.lt.s32.totalorder %s502, 3
        %s504 = scalar_select %p503, %s502, 3
        %s505 = scalar_lea.vmem %s2, %s504
        %s506 = smul.u32 2, %s35
        %s507 = smul.u32 2, %s35
        %p508 = scmp.lt.s32.totalorder %s507, 3
        %s509 = scalar_select %p508, %s507, 3
        %s510 = scalar_lea.vmem %s3, %s509
        %s511 = smul.u32 2, %s35
        %s512 = smul.u32 2, %s35
        %s513 = smul.u32 2, %s35
        %v514 = vld [vmem:[%s424] sm:$0xff]
        %v515 = vld [vmem:[%s424 + $0x8] sm:$0xff]
        %v516 = vld [vmem:[%s433] sm:$0x1]
        %v517 = vld [vmem:[%s433 + $0x1] sm:$0x1]
        %v518 = vld [vmem:[%s505] sm:$0x1]
        %v519 = vld [vmem:[%s505 + $0x1] sm:$0x1]
        %v520 = vld [vmem:[%s510] sm:$0x1]
        %v521 = vld [vmem:[%s510 + $0x1] sm:$0x1]
        %v522 = vld [vmem:[#allocation7] sm:$0xff]
        %v523 = vld [vmem:[#allocation7 + $0x8] sm:$0xff]
        %v524 = vld [vmem:[#allocation7 + $0x10] sm:$0xff]
        %v525 = vld [vmem:[#allocation7 + $0x18] sm:$0xff]
        %vm526 = vcmask 261120
        %v528 = vsel %vm526, %v514, 0
        %v531 = vsel %vm526, %v515, 0
        %533 = vmatprep.subr.mxu0 0.0
        %534 = vmatpush1.msra.mxu0 %v522
        %535 = vmatprep.subr.mxu0 0.0
        %536 = vmatpush1.msra.mxu0 %v523
        %537 = vmatprep.subr.mxu0 0.0
        %538 = vmatpush1.msra.mxu0 %v524
        %539 = vmatprep.subr.mxu0 0.0
        %540 = vmatpush1.msra.mxu0 %v525
        %541 = vmatprep.subr.mxu0 0.0
        %542 = vmatpush1.msra.mxu0 0.0
        %543 = vmatprep.subr.mxu0 0.0
        %544 = vmatpush1.msra.mxu0 0.0
        %545 = vmatprep.subr.mxu0 0.0
        %546 = vmatpush1.msra.mxu0 0.0
        %547 = vmatprep.subr.mxu0 0.0
        %548 = vmatpush1.msra.mxu0 0.0
        %549 = vmatprep.subr.mxu0 0.0
        %550 = vmatpush1.msra.mxu0 0.0
        %551 = vmatprep.subr.mxu0 0.0
        %552 = vmatpush1.msra.mxu0 0.0
        %553 = vmatprep.subr.mxu0 0.0
        %554 = vmatpush1.msra.mxu0 0.0
        %555 = vmatprep.subr.mxu0 0.0
        %556 = vmatpush1.msra.mxu0 0.0
        %557 = vmatprep.subr.mxu0 0.0
        %558 = vmatpush1.msra.mxu0 0.0
        %559 = vmatprep.subr.mxu0 0.0
        %560 = vmatpush1.msra.mxu0 0.0
        %561 = vmatprep.subr.mxu0 0.0
        %562 = vmatpush1.msra.mxu0 0.0
        %563 = vmatprep.subr.mxu0 0.0
        %564 = vmatpush1.msra.mxu0 0.0
        %565 = vmatprep.subr.mxu0 0.0
        %566 = vmatpush1.msra.mxu0 0.0
        %567 = vmatprep.subr.mxu0 0.0
        %568 = vmatpush1.msra.mxu0 0.0
        %569 = vmatprep.subr.mxu0 0.0
        %570 = vmatpush1.msra.mxu0 0.0
        %571 = vmatprep.subr.mxu0 0.0
        %572 = vmatpush1.msra.mxu0 0.0
        %573 = vmatprep.subr.mxu0 0.0
        %574 = vmatpush1.msra.mxu0 0.0
        %575 = vmatprep.subr.mxu0 0.0
        %576 = vmatpush1.msra.mxu0 0.0
        %577 = vmatprep.subr.mxu0 0.0
        %578 = vmatpush1.msra.mxu0 0.0
        %579 = vmatprep.subr.mxu0 0.0
        %580 = vmatpush1.msra.mxu0 0.0
        %581 = vmatprep.subr.mxu0 0.0
        %582 = vmatpush1.msra.mxu0 0.0
        %583 = vmatprep.subr.mxu0 0.0
        %584 = vmatpush1.msra.mxu0 0.0
        %585 = vmatprep.subr.mxu0 0.0
        %586 = vmatpush1.msra.mxu0 0.0
        %587 = vmatprep.subr.mxu0 0.0
        %588 = vmatpush1.msra.mxu0 0.0
        %589 = vmatprep.subr.mxu0 0.0
        %590 = vmatpush1.msra.mxu0 0.0
        %591 = vmatprep.subr.mxu0 0.0
        %592 = vmatpush1.msra.mxu0 0.0
        %593 = vmatprep.subr.mxu0 0.0
        %594 = vmatpush1.msra.mxu0 0.0
        %595 = vmatprep.subr.mxu0 0.0
        %596 = vmatpush1.msra.mxu0 0.0
        %597 = vmatprep.mubr.f32.mxu0 0.0
        %598 = vmatmul.mubr.f32.gmra.mrb[0].mxu0 %v528
        %v599 = vpop.f32.mrb[0].mxu0
        %v600 = vadd.f32 0.0, %v599
        %v601 = vpop.f32.mrb[0].mxu0
        %602 = vmatprep.mubr.f32.mxu0 0.0
        %603 = vmatmul.mubr.f32.gmra.mrb[0].mxu0 %v531
        %v604 = vpop.f32.mrb[0].mxu0
        %v605 = vadd.f32 0.0, %v604
        %v606 = vpop.f32.mrb[0].mxu0
        %607 = vdwg.mxu0
        %v608 = vld [vmem:[#allocation8] sm:$0xff]
        %v609 = vld [vmem:[#allocation8 + $0x8] sm:$0xff]
        %v610 = vld [vmem:[#allocation8 + $0x10] sm:$0xff]
        %v611 = vld [vmem:[#allocation8 + $0x18] sm:$0xff]
        %v614 = vcombine.low %v516, %v517
        %v616 = vunpack.c.l.s4 1966171168
        %v617 = vunpack.c.0.s8 %v616
        %v618 = vlaneseq
        %v619 = vshrl.u32 %v618, 7
        %v620 = vsub.s32 %v617, %v619
        %v621 = vrot.slane %v614, %v620
        %v623 = vunpack.c.l.s4 1966171168
        %v624 = vunpack.c.0.s8 %v623
        %v625 = vlaneseq
        %v626 = vshrl.u32 %v625, 7
        %v627 = vsub.s32 %v624, %v626
        %v628 = vrot.slane %v621, %v627
        %v629 = vsel %vm526, %v628, 0
        %631 = vmatprep.subr.mxu0 0.0
        %632 = vmatpush1.msra.mxu0 %v608
        %633 = vmatprep.subr.mxu0 0.0
        %634 = vmatpush1.msra.mxu0 %v609
        %635 = vmatprep.subr.mxu0 0.0
        %636 = vmatpush1.msra.mxu0 %v610
        %637 = vmatprep.subr.mxu0 0.0
        %638 = vmatpush1.msra.mxu0 %v611
        %639 = vmatprep.subr.mxu0 0.0
        %640 = vmatpush1.msra.mxu0 0.0
        %641 = vmatprep.subr.mxu0 0.0
        %642 = vmatpush1.msra.mxu0 0.0
        %643 = vmatprep.subr.mxu0 0.0
        %644 = vmatpush1.msra.mxu0 0.0
        %645 = vmatprep.subr.mxu0 0.0
        %646 = vmatpush1.msra.mxu0 0.0
        %647 = vmatprep.subr.mxu0 0.0
        %648 = vmatpush1.msra.mxu0 0.0
        %649 = vmatprep.subr.mxu0 0.0
        %650 = vmatpush1.msra.mxu0 0.0
        %651 = vmatprep.subr.mxu0 0.0
        %652 = vmatpush1.msra.mxu0 0.0
        %653 = vmatprep.subr.mxu0 0.0
        %654 = vmatpush1.msra.mxu0 0.0
        %655 = vmatprep.subr.mxu0 0.0
        %656 = vmatpush1.msra.mxu0 0.0
        %657 = vmatprep.subr.mxu0 0.0
        %658 = vmatpush1.msra.mxu0 0.0
        %659 = vmatprep.subr.mxu0 0.0
        %660 = vmatpush1.msra.mxu0 0.0
        %661 = vmatprep.subr.mxu0 0.0
        %662 = vmatpush1.msra.mxu0 0.0
        %663 = vmatprep.subr.mxu0 0.0
        %664 = vmatpush1.msra.mxu0 0.0
        %665 = vmatprep.subr.mxu0 0.0
        %666 = vmatpush1.msra.mxu0 0.0
        %667 = vmatprep.subr.mxu0 0.0
        %668 = vmatpush1.msra.mxu0 0.0
        %669 = vmatprep.subr.mxu0 0.0
        %670 = vmatpush1.msra.mxu0 0.0
        %671 = vmatprep.subr.mxu0 0.0
        %672 = vmatpush1.msra.mxu0 0.0
        %673 = vmatprep.subr.mxu0 0.0
        %674 = vmatpush1.msra.mxu0 0.0
        %675 = vmatprep.subr.mxu0 0.0
        %676 = vmatpush1.msra.mxu0 0.0
        %677 = vmatprep.subr.mxu0 0.0
        %678 = vmatpush1.msra.mxu0 0.0
        %679 = vmatprep.subr.mxu0 0.0
        %680 = vmatpush1.msra.mxu0 0.0
        %681 = vmatprep.subr.mxu0 0.0
        %682 = vmatpush1.msra.mxu0 0.0
        %683 = vmatprep.subr.mxu0 0.0
        %684 = vmatpush1.msra.mxu0 0.0
        %685 = vmatprep.subr.mxu0 0.0
        %686 = vmatpush1.msra.mxu0 0.0
        %687 = vmatprep.subr.mxu0 0.0
        %688 = vmatpush1.msra.mxu0 0.0
        %689 = vmatprep.subr.mxu0 0.0
        %690 = vmatpush1.msra.mxu0 0.0
        %691 = vmatprep.subr.mxu0 0.0
        %692 = vmatpush1.msra.mxu0 0.0
        %693 = vmatprep.subr.mxu0 0.0
        %694 = vmatpush1.msra.mxu0 0.0
        %695 = vmatprep.mubr.f32.mxu0 0.0
        %696 = vmatmul.mubr.f32.gmra.mrb[0].mxu0 %v629
        %v697 = vpop.f32.mrb[0].mxu0
        %v698 = vadd.f32 0.0, %v697
        %v699 = vpop.f32.mrb[0].mxu0
        %700 = vdwg.mxu0
        %v703 = vunpack.c.l.s4 1966171168
        %v704 = vunpack.c.0.s8 %v703
        %v705 = vlaneseq
        %v706 = vshrl.u32 %v705, 7
        %v707 = vsub.s32 %v704, %v706
        %v708 = vrot.slane %v698, %v707
        %v709 = vcombine.high %v708, %v708
        %v711 = vunpack.c.l.s4 1966171168
        %v712 = vunpack.c.0.s8 %v711
        %v713 = vlaneseq
        %v714 = vshrl.u32 %v713, 7
        %v715 = vsub.s32 %v712, %v714
        %v716 = vrot.slane %v708, %v715
        %v718 = vunpack.c.l.s4 1966171168
        %v719 = vunpack.c.0.s8 %v718
        %v720 = vlaneseq
        %v721 = vshrl.u32 %v720, 7
        %v722 = vsub.s32 %v719, %v721
        %v723 = vrot.slane %v709, %v722
        %v724 = vlaneseq
        %v725 = vshrl.u32 %v724, 7
        %v726 = vsub.s32 0, %v725
        %v727 = vrot.slane %v716, %v726
        %v728 = vlaneseq
        %v729 = vshrl.u32 %v728, 7
        %v730 = vsub.s32 0, %v729
        %v731 = vrot.slane %v723, %v730
        %v734 = vadd.f32 %v600, %v727
        %v735 = vadd.f32 %v605, %v731
        %v736 = vtanh.pop %v734
        %v737 = vtanh.pop %v735
        %v738 = vld [vmem:[%s7] sm:$0x1]
        %v740 = vlaneseq
        %v741 = vshrl.u32 %v740, 7
        %v742 = vsub.s32 0, %v741
        %v743 = vrot.slane %v738, %v742
        %v745 = vmul.f32 %v736, %v743
        %v746 = vmul.f32 %v737, %v743
        %v747 = vsel %vm526, %v745, 0.0
        %748 = vadd.xlane.f32.xlu0 %v747
        %v749 = vpop.xlane.xlu0 %748
        %v750 = vsel %vm526, %v746, 0.0
        %751 = vadd.xlane.f32.xlu0 %v750
        %v752 = vpop.xlane.xlu0 %751
        %v755 = vlaneseq
        %v756 = vshrl.u32 %v755, 7
        %v757 = vsub.s32 0, %v756
        %v758 = vrot.slane %v518, %v757
        %v759 = vlaneseq
        %v760 = vshrl.u32 %v759, 7
        %v761 = vsub.s32 0, %v760
        %v762 = vrot.slane %v519, %v761
        %764 = vbcast.lane.b32.xlu0 %v758, 256
        %v765 = vpop.permute.xlu0 %764
        %767 = vbcast.lane.b32.xlu0 %v762, 256
        %v768 = vpop.permute.xlu0 %767
        %v771 = vadd.f32 %v749, %v765
        %v772 = vadd.f32 %v752, %v768
        %775 = vset.pattern.permute.xlu0 0
        %776 = vperm.xlu0 %775, %v771
        %v777 = vpop.permute.xlu0 %776
        %778 = vset.pattern.permute.xlu0 0
        %779 = vperm.xlu0 %778, %v772
        %v780 = vpop.permute.xlu0 %779
        %v781 = vlaneseq
        %v782 = vand.u32 %v781, 127
        %v783 = vlaneseq
        %v784 = vshrl.u32 %v783, 7
        %v785 = vsub.s32 %v782, %v784
        %v786 = vrot.slane %v777, %v785
        %v787 = vlaneseq
        %v788 = vshrl.u32 %v787, 7
        %v789 = vsub.s32 %v782, %v788
        %v790 = vrot.slane %v780, %v789
        %vm791 = vcmask 1041409
        %v792 = vsel %vm791, %v790, %v786
        %vm794 = vcmask 58368
        %v795 = vsel %vm794, %v792, -inf
        %796 = vmax.xlane.f32.xlu0 %v795
        %v797 = vpop.xlane.xlu0 %796
        %v799 = vlaneseq
        %v800 = vshrl.u32 %v799, 7
        %v801 = vsub.s32 0, %v800
        %v802 = vrot.slane %v797, %v801
        %v803 = vlaneseq
        %v804 = vshrl.u32 %v803, 7
        %v805 = vsub.s32 1, %v804
        %v806 = vrot.slane %v797, %v805
        %v809 = vsub.f32 %v771, %v802
        %v810 = vsub.f32 %v772, %v806
        %v811 = vmul.f32 %v809, 1.442695
        %v812 = vpow.pop %v811
        %v813 = vmul.f32 %v810, 1.442695
        %v814 = vpow.pop %v813
        %817 = vset.pattern.permute.xlu0 0
        %818 = vperm.xlu0 %817, %v812
        %v819 = vpop.permute.xlu0 %818
        %820 = vset.pattern.permute.xlu0 0
        %821 = vperm.xlu0 %820, %v814
        %v822 = vpop.permute.xlu0 %821
        %v823 = vlaneseq
        %v824 = vshrl.u32 %v823, 7
        %v825 = vsub.s32 %v782, %v824
        %v826 = vrot.slane %v819, %v825
        %v827 = vlaneseq
        %v828 = vshrl.u32 %v827, 7
        %v829 = vsub.s32 %v782, %v828
        %v830 = vrot.slane %v822, %v829
        %v831 = vsel %vm791, %v830, %v826
        %v833 = vsel %vm794, %v831, 0.0
        %834 = vadd.xlane.f32.xlu0 %v833
        %v835 = vpop.xlane.xlu0 %834
        %v836 = vrcp.pop %v835
        %v838 = vlaneseq
        %v839 = vshrl.u32 %v838, 7
        %v840 = vsub.s32 0, %v839
        %v841 = vrot.slane %v836, %v840
        %v842 = vlaneseq
        %v843 = vshrl.u32 %v842, 7
        %v844 = vsub.s32 1, %v843
        %v845 = vrot.slane %v836, %v844
        %v848 = vmul.f32 %v812, %v841
        %v849 = vmul.f32 %v814, %v845
        %851 = vset.pattern.permute.xlu0 0
        %852 = vperm.xlu0 %851, %v848
        %v853 = vpop.permute.xlu0 %852
        %v854 = vlaneseq
        %v855 = vshrl.u32 %v854, 7
        %v856 = vsub.s32 %v782, %v855
        %v857 = vrot.slane %v853, %v856
        %vm858 = vcmask 64512
        %v859 = vsel %vm858, %v857, 0
        %861 = vmatprep.subr.mxu0 0.0
        %862 = vmatpush1.msra.mxu0 %v514
        %863 = vmatprep.subr.mxu0 0.0
        %864 = vmatpush1.msra.mxu0 0.0
        %865 = vmatprep.subr.mxu0 0.0
        %866 = vmatpush1.msra.mxu0 0.0
        %867 = vmatprep.subr.mxu0 0.0
        %868 = vmatpush1.msra.mxu0 0.0
        %869 = vmatprep.subr.mxu0 0.0
        %870 = vmatpush1.msra.mxu0 0.0
        %871 = vmatprep.subr.mxu0 0.0
        %872 = vmatpush1.msra.mxu0 0.0
        %873 = vmatprep.subr.mxu0 0.0
        %874 = vmatpush1.msra.mxu0 0.0
        %875 = vmatprep.subr.mxu0 0.0
        %876 = vmatpush1.msra.mxu0 0.0
        %877 = vmatprep.subr.mxu0 0.0
        %878 = vmatpush1.msra.mxu0 0.0
        %879 = vmatprep.subr.mxu0 0.0
        %880 = vmatpush1.msra.mxu0 0.0
        %881 = vmatprep.subr.mxu0 0.0
        %882 = vmatpush1.msra.mxu0 0.0
        %883 = vmatprep.subr.mxu0 0.0
        %884 = vmatpush1.msra.mxu0 0.0
        %885 = vmatprep.subr.mxu0 0.0
        %886 = vmatpush1.msra.mxu0 0.0
        %887 = vmatprep.subr.mxu0 0.0
        %888 = vmatpush1.msra.mxu0 0.0
        %889 = vmatprep.subr.mxu0 0.0
        %890 = vmatpush1.msra.mxu0 0.0
        %891 = vmatprep.subr.mxu0 0.0
        %892 = vmatpush1.msra.mxu0 0.0
        %893 = vmatprep.subr.mxu0 0.0
        %894 = vmatpush1.msra.mxu0 0.0
        %895 = vmatprep.subr.mxu0 0.0
        %896 = vmatpush1.msra.mxu0 0.0
        %897 = vmatprep.subr.mxu0 0.0
        %898 = vmatpush1.msra.mxu0 0.0
        %899 = vmatprep.subr.mxu0 0.0
        %900 = vmatpush1.msra.mxu0 0.0
        %901 = vmatprep.subr.mxu0 0.0
        %902 = vmatpush1.msra.mxu0 0.0
        %903 = vmatprep.subr.mxu0 0.0
        %904 = vmatpush1.msra.mxu0 0.0
        %905 = vmatprep.subr.mxu0 0.0
        %906 = vmatpush1.msra.mxu0 0.0
        %907 = vmatprep.subr.mxu0 0.0
        %908 = vmatpush1.msra.mxu0 0.0
        %909 = vmatprep.subr.mxu0 0.0
        %910 = vmatpush1.msra.mxu0 0.0
        %911 = vmatprep.subr.mxu0 0.0
        %912 = vmatpush1.msra.mxu0 0.0
        %913 = vmatprep.subr.mxu0 0.0
        %914 = vmatpush1.msra.mxu0 0.0
        %915 = vmatprep.subr.mxu0 0.0
        %916 = vmatpush1.msra.mxu0 0.0
        %917 = vmatprep.subr.mxu0 0.0
        %918 = vmatpush1.msra.mxu0 0.0
        %919 = vmatprep.subr.mxu0 0.0
        %920 = vmatpush1.msra.mxu0 0.0
        %921 = vmatprep.subr.mxu0 0.0
        %922 = vmatpush1.msra.mxu0 0.0
        %923 = vmatprep.subr.mxu0 0.0
        %924 = vmatpush1.msra.mxu0 0.0
        %925 = vmatprep.mubr.f32.mxu0 0.0
        %926 = vmatmul.mubr.f32.gmra.mrb[0].mxu0 %v859
        %v927 = vpop.f32.mrb[0].mxu0
        %v928 = vadd.f32 0.0, %v927
        %v929 = vpop.f32.mrb[0].mxu0
        %930 = vdwg.mxu0
        %932 = vset.pattern.permute.xlu0 0
        %933 = vperm.xlu0 %932, %v849
        %v934 = vpop.permute.xlu0 %933
        %v935 = vlaneseq
        %v936 = vshrl.u32 %v935, 7
        %v937 = vsub.s32 %v782, %v936
        %v938 = vrot.slane %v934, %v937
        %v939 = vsel %vm858, %v938, 0
        %941 = vmatprep.subr.mxu0 0.0
        %942 = vmatpush1.msra.mxu0 %v515
        %943 = vmatprep.subr.mxu0 0.0
        %944 = vmatpush1.msra.mxu0 0.0
        %945 = vmatprep.subr.mxu0 0.0
        %946 = vmatpush1.msra.mxu0 0.0
        %947 = vmatprep.subr.mxu0 0.0
        %948 = vmatpush1.msra.mxu0 0.0
        %949 = vmatprep.subr.mxu0 0.0
        %950 = vmatpush1.msra.mxu0 0.0
        %951 = vmatprep.subr.mxu0 0.0
        %952 = vmatpush1.msra.mxu0 0.0
        %953 = vmatprep.subr.mxu0 0.0
        %954 = vmatpush1.msra.mxu0 0.0
        %955 = vmatprep.subr.mxu0 0.0
        %956 = vmatpush1.msra.mxu0 0.0
        %957 = vmatprep.subr.mxu0 0.0
        %958 = vmatpush1.msra.mxu0 0.0
        %959 = vmatprep.subr.mxu0 0.0
        %960 = vmatpush1.msra.mxu0 0.0
        %961 = vmatprep.subr.mxu0 0.0
        %962 = vmatpush1.msra.mxu0 0.0
        %963 = vmatprep.subr.mxu0 0.0
        %964 = vmatpush1.msra.mxu0 0.0
        %965 = vmatprep.subr.mxu0 0.0
        %966 = vmatpush1.msra.mxu0 0.0
        %967 = vmatprep.subr.mxu0 0.0
        %968 = vmatpush1.msra.mxu0 0.0
        %969 = vmatprep.subr.mxu0 0.0
        %970 = vmatpush1.msra.mxu0 0.0
        %971 = vmatprep.subr.mxu0 0.0
        %972 = vmatpush1.msra.mxu0 0.0
        %973 = vmatprep.subr.mxu0 0.0
        %974 = vmatpush1.msra.mxu0 0.0
        %975 = vmatprep.subr.mxu0 0.0
        %976 = vmatpush1.msra.mxu0 0.0
        %977 = vmatprep.subr.mxu0 0.0
        %978 = vmatpush1.msra.mxu0 0.0
        %979 = vmatprep.subr.mxu0 0.0
        %980 = vmatpush1.msra.mxu0 0.0
        %981 = vmatprep.subr.mxu0 0.0
        %982 = vmatpush1.msra.mxu0 0.0
        %983 = vmatprep.subr.mxu0 0.0
        %984 = vmatpush1.msra.mxu0 0.0
        %985 = vmatprep.subr.mxu0 0.0
        %986 = vmatpush1.msra.mxu0 0.0
        %987 = vmatprep.subr.mxu0 0.0
        %988 = vmatpush1.msra.mxu0 0.0
        %989 = vmatprep.subr.mxu0 0.0
        %990 = vmatpush1.msra.mxu0 0.0
        %991 = vmatprep.subr.mxu0 0.0
        %992 = vmatpush1.msra.mxu0 0.0
        %993 = vmatprep.subr.mxu0 0.0
        %994 = vmatpush1.msra.mxu0 0.0
        %995 = vmatprep.subr.mxu0 0.0
        %996 = vmatpush1.msra.mxu0 0.0
        %997 = vmatprep.subr.mxu0 0.0
        %998 = vmatpush1.msra.mxu0 0.0
        %999 = vmatprep.subr.mxu0 0.0
        %1000 = vmatpush1.msra.mxu0 0.0
        %1001 = vmatprep.subr.mxu0 0.0
        %1002 = vmatpush1.msra.mxu0 0.0
        %1003 = vmatprep.subr.mxu0 0.0
        %1004 = vmatpush1.msra.mxu0 0.0
        %1005 = vmatprep.mubr.f32.mxu0 0.0
        %1006 = vmatmul.mubr.f32.gmra.mrb[0].mxu0 %v939
        %v1007 = vpop.f32.mrb[0].mxu0
        %v1008 = vadd.f32 0.0, %v1007
        %v1009 = vpop.f32.mrb[0].mxu0
        %1010 = vdwg.mxu0
        %v1011 = vadd.f32 %v928, %v516
        %v1012 = vadd.f32 %v1008, %v517
        %v1013 = vld [vmem:[#allocation10] sm:$0xff]
        %v1014 = vld [vmem:[#allocation10 + $0x8] sm:$0xff]
        %v1015 = vld [vmem:[#allocation10 + $0x10] sm:$0xff]
        %v1016 = vld [vmem:[#allocation10 + $0x18] sm:$0xff]
        %v1019 = vrot.slane %v1012, 7
        %v1020 = vsel %vm791, %v1019, %v1011
        %v1021 = vsel %vm526, %v1020, 0
        %1023 = vmatprep.subr.mxu0 0.0
        %1024 = vmatpush1.msra.mxu0 %v1013
        %1025 = vmatprep.subr.mxu0 0.0
        %1026 = vmatpush1.msra.mxu0 %v1014
        %1027 = vmatprep.subr.mxu0 0.0
        %1028 = vmatpush1.msra.mxu0 %v1015
        %1029 = vmatprep.subr.mxu0 0.0
        %1030 = vmatpush1.msra.mxu0 %v1016
        %1031 = vmatprep.subr.mxu0 0.0
        %1032 = vmatpush1.msra.mxu0 0.0
        %1033 = vmatprep.subr.mxu0 0.0
        %1034 = vmatpush1.msra.mxu0 0.0
        %1035 = vmatprep.subr.mxu0 0.0
        %1036 = vmatpush1.msra.mxu0 0.0
        %1037 = vmatprep.subr.mxu0 0.0
        %1038 = vmatpush1.msra.mxu0 0.0
        %1039 = vmatprep.subr.mxu0 0.0
        %1040 = vmatpush1.msra.mxu0 0.0
        %1041 = vmatprep.subr.mxu0 0.0
        %1042 = vmatpush1.msra.mxu0 0.0
        %1043 = vmatprep.subr.mxu0 0.0
        %1044 = vmatpush1.msra.mxu0 0.0
        %1045 = vmatprep.subr.mxu0 0.0
        %1046 = vmatpush1.msra.mxu0 0.0
        %1047 = vmatprep.subr.mxu0 0.0
        %1048 = vmatpush1.msra.mxu0 0.0
        %1049 = vmatprep.subr.mxu0 0.0
        %1050 = vmatpush1.msra.mxu0 0.0
        %1051 = vmatprep.subr.mxu0 0.0
        %1052 = vmatpush1.msra.mxu0 0.0
        %1053 = vmatprep.subr.mxu0 0.0
        %1054 = vmatpush1.msra.mxu0 0.0
        %1055 = vmatprep.subr.mxu0 0.0
        %1056 = vmatpush1.msra.mxu0 0.0
        %1057 = vmatprep.subr.mxu0 0.0
        %1058 = vmatpush1.msra.mxu0 0.0
        %1059 = vmatprep.subr.mxu0 0.0
        %1060 = vmatpush1.msra.mxu0 0.0
        %1061 = vmatprep.subr.mxu0 0.0
        %1062 = vmatpush1.msra.mxu0 0.0
        %1063 = vmatprep.subr.mxu0 0.0
        %1064 = vmatpush1.msra.mxu0 0.0
        %1065 = vmatprep.subr.mxu0 0.0
        %1066 = vmatpush1.msra.mxu0 0.0
        %1067 = vmatprep.subr.mxu0 0.0
        %1068 = vmatpush1.msra.mxu0 0.0
        %1069 = vmatprep.subr.mxu0 0.0
        %1070 = vmatpush1.msra.mxu0 0.0
        %1071 = vmatprep.subr.mxu0 0.0
        %1072 = vmatpush1.msra.mxu0 0.0
        %1073 = vmatprep.subr.mxu0 0.0
        %1074 = vmatpush1.msra.mxu0 0.0
        %1075 = vmatprep.subr.mxu0 0.0
        %1076 = vmatpush1.msra.mxu0 0.0
        %1077 = vmatprep.subr.mxu0 0.0
        %1078 = vmatpush1.msra.mxu0 0.0
        %1079 = vmatprep.subr.mxu0 0.0
        %1080 = vmatpush1.msra.mxu0 0.0
        %1081 = vmatprep.subr.mxu0 0.0
        %1082 = vmatpush1.msra.mxu0 0.0
        %1083 = vmatprep.subr.mxu0 0.0
        %1084 = vmatpush1.msra.mxu0 0.0
        %1085 = vmatprep.subr.mxu0 0.0
        %1086 = vmatpush1.msra.mxu0 0.0
        %1087 = vmatprep.mubr.f32.mxu0 0.0
        %1088 = vmatmul.mubr.f32.gmra.mrb[0].mxu0 %v1021
        %v1089 = vpop.f32.mrb[0].mxu0
        %v1090 = vadd.f32 0.0, %v1089
        %v1091 = vpop.f32.mrb[0].mxu0
        %1092 = vdwg.mxu0
        %v1095 = vunpack.c.l.s4 1966171168
        %v1096 = vunpack.c.0.s8 %v1095
        %v1097 = vlaneseq
        %v1098 = vshrl.u32 %v1097, 7
        %v1099 = vsub.s32 %v1096, %v1098
        %v1100 = vrot.slane %v1090, %v1099
        %v1101 = vcombine.high %v1100, %v1100
        %v1103 = vunpack.c.l.s4 1966171168
        %v1104 = vunpack.c.0.s8 %v1103
        %v1105 = vlaneseq
        %v1106 = vshrl.u32 %v1105, 7
        %v1107 = vsub.s32 %v1104, %v1106
        %v1108 = vrot.slane %v1100, %v1107
        %v1110 = vunpack.c.l.s4 1966171168
        %v1111 = vunpack.c.0.s8 %v1110
        %v1112 = vlaneseq
        %v1113 = vshrl.u32 %v1112, 7
        %v1114 = vsub.s32 %v1111, %v1113
        %v1115 = vrot.slane %v1101, %v1114
        %v1116 = vlaneseq
        %v1117 = vshrl.u32 %v1116, 7
        %v1118 = vsub.s32 0, %v1117
        %v1119 = vrot.slane %v1108, %v1118
        %v1120 = vlaneseq
        %v1121 = vshrl.u32 %v1120, 7
        %v1122 = vsub.s32 0, %v1121
        %v1123 = vrot.slane %v1115, %v1122
        %1124 = vrot.lane.b32.xlu0 %v1119, 32
        %v1125 = vpop.permute.xlu0 %1124
        %1126 = vrot.lane.b32.xlu0 %v1123, 32
        %v1127 = vpop.permute.xlu0 %1126
        %v1130 = vadd.f32 %v600, %v1125
        %v1131 = vadd.f32 %v605, %v1127
        %v1132 = vtanh.pop %v1130
        %v1133 = vtanh.pop %v1131
        %v1134 = vld [vmem:[%s8] sm:$0x1]
        %v1136 = vlaneseq
        %v1137 = vshrl.u32 %v1136, 7
        %v1138 = vsub.s32 0, %v1137
        %v1139 = vrot.slane %v1134, %v1138
        %1140 = vrot.lane.b32.xlu0 %v1139, 32
        %v1141 = vpop.permute.xlu0 %1140
        %v1143 = vmul.f32 %v1132, %v1141
        %v1144 = vmul.f32 %v1133, %v1141
        %1147 = vrot.lane.b32.xlu0 %v1143, 96
        %v1148 = vpop.permute.xlu0 %1147
        %1149 = vrot.lane.b32.xlu0 %v1144, 96
        %v1150 = vpop.permute.xlu0 %1149
        %v1153 = vsel %vm526, %v1148, 0.0
        %1154 = vadd.xlane.f32.xlu0 %v1153
        %v1155 = vpop.xlane.xlu0 %1154
        %v1156 = vsel %vm526, %v1150, 0.0
        %1157 = vadd.xlane.f32.xlu0 %v1156
        %v1158 = vpop.xlane.xlu0 %1157
        %v1161 = vlaneseq
        %v1162 = vshrl.u32 %v1161, 7
        %v1163 = vsub.s32 0, %v1162
        %v1164 = vrot.slane %v520, %v1163
        %v1165 = vlaneseq
        %v1166 = vshrl.u32 %v1165, 7
        %v1167 = vsub.s32 0, %v1166
        %v1168 = vrot.slane %v521, %v1167
        %1170 = vbcast.lane.b32.xlu0 %v1164, 256
        %v1171 = vpop.permute.xlu0 %1170
        %1173 = vbcast.lane.b32.xlu0 %v1168, 256
        %v1174 = vpop.permute.xlu0 %1173
        %v1177 = vadd.f32 %v1155, %v1171
        %v1178 = vadd.f32 %v1158, %v1174
        %1181 = vset.pattern.permute.xlu0 0
        %1182 = vperm.xlu0 %1181, %v1177
        %v1183 = vpop.permute.xlu0 %1182
        %1184 = vset.pattern.permute.xlu0 0
        %1185 = vperm.xlu0 %1184, %v1178
        %v1186 = vpop.permute.xlu0 %1185
        %v1187 = vlaneseq
        %v1188 = vshrl.u32 %v1187, 7
        %v1189 = vsub.s32 %v782, %v1188
        %v1190 = vrot.slane %v1183, %v1189
        %v1191 = vlaneseq
        %v1192 = vshrl.u32 %v1191, 7
        %v1193 = vsub.s32 %v782, %v1192
        %v1194 = vrot.slane %v1186, %v1193
        %v1195 = vsel %vm791, %v1194, %v1190
        %v1197 = vsel %vm794, %v1195, -inf
        %1198 = vmax.xlane.f32.xlu0 %v1197
        %v1199 = vpop.xlane.xlu0 %1198
        %v1201 = vlaneseq
        %v1202 = vshrl.u32 %v1201, 7
        %v1203 = vsub.s32 0, %v1202
        %v1204 = vrot.slane %v1199, %v1203
        %v1205 = vlaneseq
        %v1206 = vshrl.u32 %v1205, 7
        %v1207 = vsub.s32 1, %v1206
        %v1208 = vrot.slane %v1199, %v1207
        %v1211 = vsub.f32 %v1177, %v1204
        %v1212 = vsub.f32 %v1178, %v1208
        %v1213 = vmul.f32 %v1211, 1.442695
        %v1214 = vpow.pop %v1213
        %v1215 = vmul.f32 %v1212, 1.442695
        %v1216 = vpow.pop %v1215
        %1219 = vset.pattern.permute.xlu0 0
        %1220 = vperm.xlu0 %1219, %v1214
        %v1221 = vpop.permute.xlu0 %1220
        %1222 = vset.pattern.permute.xlu0 0
        %1223 = vperm.xlu0 %1222, %v1216
        %v1224 = vpop.permute.xlu0 %1223
        %v1225 = vlaneseq
        %v1226 = vshrl.u32 %v1225, 7
        %v1227 = vsub.s32 %v782, %v1226
        %v1228 = vrot.slane %v1221, %v1227
        %v1229 = vlaneseq
        %v1230 = vshrl.u32 %v1229, 7
        %v1231 = vsub.s32 %v782, %v1230
        %v1232 = vrot.slane %v1224, %v1231
        %v1233 = vsel %vm791, %v1232, %v1228
        %v1235 = vsel %vm794, %v1233, 0.0
        %1236 = vadd.xlane.f32.xlu0 %v1235
        %v1237 = vpop.xlane.xlu0 %1236
        %v1238 = vrcp.pop %v1237
        %v1240 = vlaneseq
        %v1241 = vshrl.u32 %v1240, 7
        %v1242 = vsub.s32 0, %v1241
        %v1243 = vrot.slane %v1238, %v1242
        %v1244 = vlaneseq
        %v1245 = vshrl.u32 %v1244, 7
        %v1246 = vsub.s32 1, %v1245
        %v1247 = vrot.slane %v1238, %v1246
        %v1250 = vmul.f32 %v1214, %v1243
        %v1251 = vmul.f32 %v1216, %v1247
        %1254 = vset.pattern.permute.xlu0 0
        %1255 = vperm.xlu0 %1254, %v1250
        %v1256 = vpop.permute.xlu0 %1255
        %1257 = vset.pattern.permute.xlu0 0
        %1258 = vperm.xlu0 %1257, %v1251
        %v1259 = vpop.permute.xlu0 %1258
        %v1260 = vlaneseq
        %v1261 = vshrl.u32 %v1260, 7
        %v1262 = vsub.s32 %v782, %v1261
        %v1263 = vrot.slane %v1256, %v1262
        %v1264 = vlaneseq
        %v1265 = vshrl.u32 %v1264, 7
        %v1266 = vsub.s32 %v782, %v1265
        %v1267 = vrot.slane %v1259, %v1266
        %vm1270 = vcmask 57344
        %1271 = vst.msk [vmem:[%s492] sm:$0x1] %vm1270, %v1263
        %1272 = vst.msk [vmem:[%s492 + $0x1] sm:$0x1] %vm1270, %v1267
        %v1273 = vlog2.pop %v1237
        %v1274 = vmul.f32 %v1273, 0.6931472
        %v1276 = vlaneseq
        %v1277 = vshrl.u32 %v1276, 7
        %v1278 = vsub.s32 0, %v1277
        %v1279 = vrot.slane %v1274, %v1278
        %v1280 = vlaneseq
        %v1281 = vshrl.u32 %v1280, 7
        %v1282 = vsub.s32 1, %v1281
        %v1283 = vrot.slane %v1274, %v1282
        %v1286 = vsub.f32 %v1211, %v1279
        %v1287 = vsub.f32 %v1212, %v1283
        %1290 = vset.pattern.permute.xlu0 0
        %1291 = vperm.xlu0 %1290, %v1286
        %v1292 = vpop.permute.xlu0 %1291
        %1293 = vset.pattern.permute.xlu0 0
        %1294 = vperm.xlu0 %1293, %v1287
        %v1295 = vpop.permute.xlu0 %1294
        %v1296 = vlaneseq
        %v1297 = vshrl.u32 %v1296, 7
        %v1298 = vsub.s32 %v782, %v1297
        %v1299 = vrot.slane %v1292, %v1298
        %v1300 = vlaneseq
        %v1301 = vshrl.u32 %v1300, 7
        %v1302 = vsub.s32 %v782, %v1301
        %v1303 = vrot.slane %v1295, %v1302
        %1306 = vst.msk [vmem:[%s499] sm:$0x1] %vm1270, %v1299
        %1307 = vst.msk [vmem:[%s499 + $0x1] sm:$0x1] %vm1270, %v1303
        %s1308 = sand.u32 %s252, 1
        %s1309 = scalar_lea.sflag [#allocation4], %s1308
        %s1310 = sand.u32 %s252, 1
        %s1311 = smul.addr %s1310, 2
        %s1312 = scalar_lea.vmem [#allocation11], %s1311
        %s1313 = sand.u32 %s278, 1
        %s1314 = scalar_lea.sflag [#allocation13], %s1313
        %s1315 = sand.u32 %s278, 1
        %s1316 = smul.addr %s1315, 2
        %s1317 = scalar_lea.vmem [#allocation12], %s1316
        // Predicated region
        $region77: #{tpu_custom_call.1} parent=55 // pred_check
          %p1318 = pneg %p262
        $region78: #{tpu_custom_call.1} parent=55 // pred_check_branch
          %1320 = sbr.rel (%p1318) target = $region80
        $region79: #{tpu_custom_call.1} parent=55 // pred_region
          %s1321 = smul.u32 2, %s35
          %s1323 = ssub.s32 32, 32
          %1324 = vsyncadd %s1309, %s1323
          %s1325 = smul.addr %s1321, 16
          %s1326 = scalar_lea.hbm %s9, %s1325
          %s1327 = sshll.u32 %s1312, 4
          %s1328 = int_to_ptr.vmem [resolvable:$true] %s1327
          %1333 = dma.vmem_to_hbm [thread:$0]  %s1328, 32, %s1326, %s1309, 16, 16, 1
        $region80: #{tpu_custom_call.1} parent=55 // pred_fallthru
          _
        // Predicated region
        $region81: #{tpu_custom_call.1} parent=55 // pred_check
          %p1334 = pneg %p288
        $region82: #{tpu_custom_call.1} parent=55 // pred_check_branch
          %1336 = sbr.rel (%p1334) target = $region84
        $region83: #{tpu_custom_call.1} parent=55 // pred_region
          %s1337 = smul.u32 2, %s35
          %s1339 = ssub.s32 32, 32
          %1340 = vsyncadd %s1314, %s1339
          %s1341 = smul.addr %s1337, 16
          %s1342 = scalar_lea.hbm %s10, %s1341
          %s1343 = sshll.u32 %s1317, 4
          %s1344 = int_to_ptr.vmem [resolvable:$true] %s1343
          %1349 = dma.vmem_to_hbm [thread:$0]  %s1344, 32, %s1342, %s1314, 16, 16, 1
        $region84: #{tpu_custom_call.1} parent=55 // pred_fallthru
          _
      $region56: #{tpu_custom_call.1} parent=5 // pred_fallthru
        _
      %p1350 = scmp.le.s32.totalorder 2, %s30
      // Predicated region
      $region85: #{tpu_custom_call.1} parent=5 // pred_check
        %p1351 = pneg %p1350
      $region86: #{tpu_custom_call.1} parent=5 // pred_check_branch
        %1353 = sbr.rel (%p1351) target = $region88
      $region87: #{tpu_custom_call.1} parent=5 // pred_region
        %s1354 = ssub.s32 %s30, 2
        // Predicated region
        $region89: #{tpu_custom_call.1} parent=87 // pred_check
          %p1355 = pneg %p268
        $region90: #{tpu_custom_call.1} parent=87 // pred_check_branch
          %1357 = sbr.rel (%p1355) target = $region92
        $region91: #{tpu_custom_call.1} parent=87 // pred_region
          %s1358 = sand.u32 %s253, 1
          %s1359 = scalar_lea.sflag [#allocation4], %s1358
          %s1360 = sand.u32 %s253, 1
          %s1361 = smul.addr %s1360, 2
          %s1362 = scalar_lea.vmem [#allocation11], %s1361
          %1363 = dma.done %s1359, 32
        $region92: #{tpu_custom_call.1} parent=87 // pred_fallthru
          _
        // Predicated region
        $region93: #{tpu_custom_call.1} parent=87 // pred_check
          %p1364 = pneg %p294
        $region94: #{tpu_custom_call.1} parent=87 // pred_check_branch
          %1366 = sbr.rel (%p1364) target = $region96
        $region95: #{tpu_custom_call.1} parent=87 // pred_region
          %s1367 = sand.u32 %s279, 1
          %s1368 = scalar_lea.sflag [#allocation13], %s1367
          %s1369 = sand.u32 %s279, 1
          %s1370 = smul.addr %s1369, 2
          %s1371 = scalar_lea.vmem [#allocation12], %s1370
          %1372 = dma.done %s1368, 32
        $region96: #{tpu_custom_call.1} parent=87 // pred_fallthru
          _
      $region88: #{tpu_custom_call.1} parent=5 // pred_fallthru
        _
    $region6: #{tpu_custom_call.1} parent=1 // loop_footer
      %s34 = sadd.s32 1, %s30
    $region7: #{tpu_custom_call.1} parent=1 // loop_footer_branch
      %29 = sbr.rel target = $region3
    $region8: #{tpu_custom_call.1} parent=1 // loop_exit
      _
    %1373 = vsyncpa [#allocation3], 1
    %s1374 = scalar_lea.sflag [#allocation3], 1
    %1375 = vsyncpa %s1374, 1
    %1376 = vsyncpa [#allocation6], 1
    %s1377 = scalar_lea.sflag [#allocation6], 1
    %1378 = vsyncpa %s1377, 1
    %1379 = vsyncpa [#allocation9], 1
    %1380 = vsyncpa [#allocation4], 1
    %s1381 = scalar_lea.sflag [#allocation4], 1
    %1382 = vsyncpa %s1381, 1
    %1383 = vsyncpa [#allocation13], 1
    %s1384 = scalar_lea.sflag [#allocation13], 1
    %1385 = vsyncpa %s1384, 1

</llo_original>
